<compile_context>
chip_gen: v7x
topology: tpu7x:2x2x1
jax: 0.10.0
libtpu: 0.0.40
codegen_flags: <defaults>
</compile_context>

<pallas_src>
import jax
import jax.numpy as jnp
from jax import lax
from jax.experimental import pallas as pl
from jax.experimental.pallas import tpu as pltpu

EMBED_DIM = 32
HIDDEN_DIM = 64


def _round_up(v, m):
    return ((v + m - 1) // m) * m


# --------------------------------------------------------------------------
# Fused kernel: LSTM stack + linear head + temperature softmax
# --------------------------------------------------------------------------
def _make_fused_kernel(num_layers, T, H, b_blk, unroll):
    G = 4 * H

    def kernel(*refs):
        # ---- unpack (order matches the pallas_call argument order) ----------
        x_ref = refs[0]             # (T*b_blk, E)  f32   layer-0 input (time-major flat)
        lg_ref = refs[1]            # (b_blk, 4H)   f32   label gates + layer-0 bias
        w_ih0_ref = refs[2]         # (E, 4H)       bf16  layer-0 input->gates (noise part)
        pos = 3
        w_ih_rest, b_rest = [], []
        for _ in range(num_layers - 1):
            w_ih_rest.append(refs[pos])        # (H, 4H) bf16
            b_rest.append(refs[pos + 1])       # (1, 4H) f32
            pos += 2
        w_hh_refs = [refs[pos + l] for l in range(num_layers)]   # (H, 4H) bf16
        pos += num_layers
        w_head_ref = refs[pos]      # (H, Vpad) bf16  pre-scaled by 1/tau
        b_head_ref = refs[pos + 1]  # (1, Vpad) f32   pre-scaled, pad cols = -1e30
        pos += 2
        out_ref = refs[pos]         # (T*b_blk, Vpad) f32
        gx_ref = refs[pos + 1]      # VMEM scratch (T*b_blk, 4H) f32
        hs_ref = refs[pos + 2]      # VMEM scratch (T*b_blk, H)  f32

        # ---- layer-0 gate projection, chunked per time step ------------------
        # Label gates + layer-0 bias folded HERE (data-parallel, off the serial
        # recurrence critical path).
        @pl.loop(0, T)
        def _(t):
            r0 = pl.multiple_of(t * b_blk, b_blk)
            x_t = x_ref[pl.ds(r0, b_blk), :].astype(jnp.bfloat16)
            gx_ref[pl.ds(r0, b_blk), :] = (
                jnp.dot(x_t, w_ih0_ref[...], preferred_element_type=jnp.float32)
                + lg_ref[...])

        # ---- serial LSTM recurrence ------------------------------------------
        def run_layer(w_hh_ref):
            w_hh = w_hh_ref[...]    # bf16 (H, 4H) = 8 vregs, hoisted out of the loop

            def step(t, carry):
                h, c = carry        # h: bf16 (b_blk, H), c: f32 (b_blk, H)
                r0 = pl.multiple_of(t * b_blk, b_blk)
                g = gx_ref[pl.ds(r0, b_blk), :] + jnp.dot(
                    h, w_hh, preferred_element_type=jnp.float32)
                # One EUP pass over the whole (b_blk, 4H) tile; g-gate columns
                # were pre-scaled by 2 so tanh(x) = 2*sigmoid(2x) - 1.
                sg = jax.nn.sigmoid(g)
                i_g = sg[:, 0 * H:1 * H]
                f_g = sg[:, 1 * H:2 * H]
                g_g = 2.0 * sg[:, 2 * H:3 * H] - 1.0
                o_g = sg[:, 3 * H:4 * H]
                c_new = f_g * c + i_g * g_g
                h_new = o_g * jnp.tanh(c_new)
                hs_ref[pl.ds(r0, b_blk), :] = h_new
                return (h_new.astype(jnp.bfloat16), c_new)

            init = (jnp.zeros((b_blk, H), jnp.bfloat16),
                    jnp.zeros((b_blk, H), jnp.float32))
            lax.fori_loop(0, T, step, init, unroll=unroll)

        run_layer(w_hh_refs[0])

        # ---- layers 1 .. L-1 ----------------------------------------------------
        for l in range(1, num_layers):
            w_ih_ref = w_ih_rest[l - 1]
            b_ref = b_rest[l - 1]

            @pl.loop(0, T)
            def _(t, w_ih_ref=w_ih_ref, b_ref=b_ref):
                r0 = pl.multiple_of(t * b_blk, b_blk)
                h_in = hs_ref[pl.ds(r0, b_blk), :].astype(jnp.bfloat16)
                gx_ref[pl.ds(r0, b_blk), :] = (
                    jnp.dot(h_in, w_ih_ref[...],
                            preferred_element_type=jnp.float32)
                    + b_ref[...])

            run_layer(w_hh_refs[l])

        # ---- head: linear (1/tau folded) + softmax, chunked per step ------------
        @pl.loop(0, T)
        def _(t):
            r0 = pl.multiple_of(t * b_blk, b_blk)
            h_t = hs_ref[pl.ds(r0, b_blk), :].astype(jnp.bfloat16)
            logits = (jnp.dot(h_t, w_head_ref[...],
                              preferred_element_type=jnp.float32)
                      + b_head_ref[...])
            z = logits - jnp.max(logits, axis=-1, keepdims=True)
            e = jnp.exp(z)
            s = jnp.sum(e, axis=-1, keepdims=True)
            out_ref[pl.ds(r0, b_blk), :] = (e / s).astype(out_ref.dtype)

    return kernel


# --------------------------------------------------------------------------
# Generator (JAX parameters + fused Pallas forward)
# --------------------------------------------------------------------------
class Generator:
    def __init__(self, vocab_size, num_classes, num_layers, seq_len=100,
                 softmax="relaxed_bernoulli", key=None):
        self.embedding_dim = EMBED_DIM
        self.hidden_dim = HIDDEN_DIM
        self.seq_len = seq_len  # module hardcodes 100; configurable for small tests
        self.vocab_size = vocab_size
        self.num_layers = num_layers
        self.act = softmax

        if key is None:
            key = jax.random.PRNGKey(0)
        keys = jax.random.split(key, 4 + 4 * num_layers)

        H, E = self.hidden_dim, self.embedding_dim
        k_lstm = 1.0 / jnp.sqrt(H)

        def gate_scale(a):
            # Pre-scale the g-gate block so tanh can be computed via sigmoid.
            return a.at[..., 2 * H:3 * H].multiply(2.0)

        # nn.Embedding default init: N(0, 1)
        self.label_embedding = jax.random.normal(keys[0], (num_classes, E), jnp.float32)
        self.noise_embedding = jax.random.normal(keys[1], (vocab_size, E), jnp.float32)

        # LSTM layers (PyTorch: uniform(-1/sqrt(H), 1/sqrt(H)), gate order i,f,g,o),
        # stored transposed (D_in, 4H) / (H, 4H) and g-gate pre-scaled.
        self.w_hh = []        # per layer, (H, 4H) f32
        self.w_ih_rest = []   # layers >= 1, (H, 4H) f32
        self.b_rest = []      # layers >= 1, (1, 4H) f32
        for l in range(num_layers):
            d_in = 2 * E if l == 0 else H
            kw = keys[2 + 4 * l: 6 + 4 * l]
            w_ih = jax.random.uniform(kw[0], (d_in, 4 * H), jnp.float32, -k_lstm, k_lstm)
            w_hh = jax.random.uniform(kw[1], (H, 4 * H), jnp.float32, -k_lstm, k_lstm)
            b_ih = jax.random.uniform(kw[2], (4 * H,), jnp.float32, -k_lstm, k_lstm)
            b_hh = jax.random.uniform(kw[3], (4 * H,), jnp.float32, -k_lstm, k_lstm)
            w_ih = gate_scale(w_ih)
            w_hh = gate_scale(w_hh)
            bias = gate_scale((b_ih + b_hh).reshape(1, 4 * H))
            self.w_hh.append(w_hh)
            if l == 0:
                self.w_ih0_noise = w_ih[:E, :]   # (E, 4H)
                self.w_ih0_label = w_ih[E:, :]   # (E, 4H)
                self.b0 = bias                   # (1, 4H)
            else:
                self.w_ih_rest.append(w_ih)
                self.b_rest.append(bias)

        # bf16 copies for MXU operands (elementwise math stays f32).
        self.w_hh_bf16 = [w.astype(jnp.bfloat16) for w in self.w_hh]
        self.w_ih_rest_bf16 = [w.astype(jnp.bfloat16) for w in self.w_ih_rest]
        self.w_ih0_noise_bf16 = self.w_ih0_noise.astype(jnp.bfloat16)

        # Linear(H, vocab_size), stored transposed (H, V)
        kl = 1.0 / jnp.sqrt(H)
        self.lin_w = jax.random.uniform(keys[-2], (H, vocab_size), jnp.float32, -kl, kl)
        self.lin_b = jax.random.uniform(keys[-1], (vocab_size,), jnp.float32, -kl, kl)

    # ----- batch-block sizing: largest block that fits a ~40 MiB VMEM budget ----
    @staticmethod
    def _choose_batch_block(B, T, Vpad, H, E):
        G = 4 * H
        per_row = (T * G * 4            # gx scratch (f32)
                   + T * H * 4          # hs scratch (f32)
                   + 2 * T * E * 4      # x input, double-buffered
                   + 2 * G * 4          # label gates, double-buffered
                   + 2 * T * Vpad * 4)  # out, double-buffered
        cap = (int((40 * 1024 * 1024) // per_row) // 8) * 8
        cap = max(8, min(128, cap))
        need = _round_up(B, 8)
        if need <= cap:
            if need >= 64:
                # split into two blocks so the "parallel" grid axis can use both
                # TensorCores on v7x even for single-block-sized batches.
                b_blk = _round_up(-(-need // 2), 8)
            else:
                b_blk = need
        else:
            b_blk = cap
        nb = -(-need // b_blk)
        return b_blk, nb

    def __call__(self, noise, labels, tau=0.2, anneal_tau=False, hard=False):
        # noise: (B, seq_len) int32 token ids; labels: (B,) int32 class ids
        B, T = noise.shape
        assert T == self.seq_len
        E, H, V, L = self.embedding_dim, self.hidden_dim, self.vocab_size, self.num_layers
        G = 4 * H
        Vpad = max(128, _round_up(V, 128))

        b_blk, nb = self._choose_batch_block(B, T, Vpad, H, E)
        Bp = nb * b_blk

        # ---- plain-JAX glue: gathers, batch padding, layout -------------------
        noise_embed = jnp.take(self.noise_embedding, noise, axis=0)   # (B, T, E)
        label_embed = jnp.take(self.label_embedding, labels, axis=0)  # (B, E)
        noise_embed = jnp.pad(noise_embed, ((0, Bp - B), (0, 0), (0, 0)))
        label_embed = jnp.pad(label_embed, ((0, Bp - B), (0, 0)))

        # Label contribution is constant over T: fold it (and the layer-0 bias)
        # into a per-batch (Bp, 4H) term added once per time step in the kernel's
        # data-parallel projection loop (not in the serial recurrence).
        label_gates = (label_embed @ self.w_ih0_label + self.b0)       # (Bp, 4H)
        label_gates = label_gates.reshape(nb, b_blk, G)

        # Layer-0 input, time-major flattened, batch-block-major:
        # row (j, t*b_blk + b) <-> batch j*b_blk + b, time t.
        x = jnp.transpose(noise_embed, (1, 0, 2))                      # (T, Bp, E)
        x = x.reshape(T, nb, b_blk, E).transpose(1, 0, 2, 3)           # (nb, T, blk, E)
        x = x.reshape(nb, T * b_blk, E)

        # Head params: fold 1/tau at trace time, pad vocab to lane-dense Vpad.
        inv_tau = 1.0 / tau
        w_head = jnp.pad(self.lin_w * inv_tau, ((0, 0), (0, Vpad - V)))
        w_head = w_head.astype(jnp.bfloat16)
        b_head = jnp.concatenate(
            [self.lin_b * inv_tau, jnp.full((Vpad - V,), -1e30, jnp.float32)]
        ).reshape(1, Vpad)

        if T <= 8:
            unroll = T
        elif b_blk >= 64:
            unroll = 2          # keep vreg pressure bounded at wide batch blocks
        else:
            unroll = 4

        kernel = _make_fused_kernel(L, T, H, b_blk, unroll)

        in_arrays = [x, label_gates, self.w_ih0_noise_bf16]
        in_specs = [
            pl.BlockSpec((None, T * b_blk, E), lambda j: (j, 0, 0)),
            pl.BlockSpec((None, b_blk, G), lambda j: (j, 0, 0)),
            pl.BlockSpec((E, G), lambda j: (0, 0)),
        ]
        for l in range(1, L):
            in_arrays += [self.w_ih_rest_bf16[l - 1], self.b_rest[l - 1]]
            in_specs += [pl.BlockSpec((H, G), lambda j: (0, 0)),
                         pl.BlockSpec((1, G), lambda j: (0, 0))]
        for l in range(L):
            in_arrays.append(self.w_hh_bf16[l])
            in_specs.append(pl.BlockSpec((H, G), lambda j: (0, 0)))
        in_arrays += [w_head, b_head]
        in_specs += [pl.BlockSpec((H, Vpad), lambda j: (0, 0)),
                     pl.BlockSpec((1, Vpad), lambda j: (0, 0))]

        out = pl.pallas_call(
            kernel,
            out_shape=jax.ShapeDtypeStruct((nb, T * b_blk, Vpad), jnp.float32),
            grid=(nb,),
            in_specs=in_specs,
            out_specs=pl.BlockSpec((None, T * b_blk, Vpad), lambda j: (j, 0, 0)),
            scratch_shapes=[
                pltpu.VMEM((T * b_blk, G), jnp.float32),   # per-layer gates_x
                pltpu.VMEM((T * b_blk, H), jnp.float32),   # per-layer hidden seq
            ],
            compiler_params=pltpu.CompilerParams(
                dimension_semantics=("parallel",),          # batch blocks -> TCs on v7x
                vmem_limit_bytes=56 * 1024 * 1024),
        )(*in_arrays)

        # ---- unscramble: (nb, T*blk, Vpad) -> (B, T, V) -------------------------
        out = out.reshape(nb, T, b_blk, Vpad).transpose(0, 2, 1, 3)
        out = out.reshape(Bp, T, Vpad)[:B, :, :V]

        # CustomSoftmax('relaxed_bernoulli') is not defined in the source file:
        # implemented as the deterministic temperature-relaxed softmax.
        # TODO(synk): stochastic relaxed-Bernoulli sampling, the `hard`
        # straight-through path and `anneal_tau` are not implemented (source
        # not provided).
        return out


# --------------------------------------------------------------------------
# Demo
# --------------------------------------------------------------------------
if __name__ == "__main__":
    key = jax.random.PRNGKey(0)
    k_model, k_noise, k_labels = jax.random.split(key, 3)

    vocab_size = 16
    num_classes = 4
    num_layers = 2
    batch = 2
    seq_len = 8

    gen = Generator(vocab_size, num_classes, num_layers, seq_len=seq_len, key=k_model)

    noise = jax.random.randint(k_noise, (batch, seq_len), 0, vocab_size, dtype=jnp.int32)
    labels = jax.random.randint(k_labels, (batch,), 0, num_classes, dtype=jnp.int32)

    out = gen(noise, labels, tau=0.2)
    out = jax.block_until_ready(out)

    assert out.shape == (batch, seq_len, vocab_size)
    assert bool(jnp.all(jnp.isfinite(out)))
    # rows are probability distributions over the vocab (exact divide in kernel)
    assert bool(jnp.allclose(out.sum(-1), 1.0, atol=1e-3))
    print("KERNEL_OK")
</pallas_src>

<mosaic_0001>
module attributes {stable_mosaic.version = 11 : i64} {
  func.func @kernel(%arg0: i32, %arg1: memref<1x64x32xf32, #tpu.memory_space<vmem>>, %arg2: memref<1x8x256xf32, #tpu.memory_space<vmem>>, %arg3: memref<32x256xbf16, #tpu.memory_space<vmem>>, %arg4: memref<64x256xbf16, #tpu.memory_space<vmem>>, %arg5: memref<1x256xf32, #tpu.memory_space<vmem>>, %arg6: memref<64x256xbf16, #tpu.memory_space<vmem>>, %arg7: memref<64x256xbf16, #tpu.memory_space<vmem>>, %arg8: memref<64x128xbf16, #tpu.memory_space<vmem>>, %arg9: memref<1x128xf32, #tpu.memory_space<vmem>>, %arg10: memref<1x64x128xf32, #tpu.memory_space<vmem>>, %arg11: memref<64x256xf32, #tpu.memory_space<vmem>>, %arg12: memref<64x64xf32, #tpu.memory_space<vmem>>) attributes {dimension_semantics = [#tpu.dimension_semantics<parallel>], iteration_bounds = array<i64: 1>, scalar_prefetch = 0 : i64, scratch_operands = 2 : i64, tpu.core_type = #tpu.core_type<tc>, window_params = [{transform_indices = @transform_0, window_bounds = array<i64: 1, 64, 32>}, {transform_indices = @transform_1, window_bounds = array<i64: 1, 8, 256>}, {pipeline_mode = #tpu.pipeline_mode<synchronous>, transform_indices = @transform_2, window_bounds = array<i64: 32, 256>}, {pipeline_mode = #tpu.pipeline_mode<synchronous>, transform_indices = @transform_3, window_bounds = array<i64: 64, 256>}, {pipeline_mode = #tpu.pipeline_mode<synchronous>, transform_indices = @transform_4, window_bounds = array<i64: 1, 256>}, {pipeline_mode = #tpu.pipeline_mode<synchronous>, transform_indices = @transform_5, window_bounds = array<i64: 64, 256>}, {pipeline_mode = #tpu.pipeline_mode<synchronous>, transform_indices = @transform_6, window_bounds = array<i64: 64, 256>}, {pipeline_mode = #tpu.pipeline_mode<synchronous>, transform_indices = @transform_7, window_bounds = array<i64: 64, 128>}, {pipeline_mode = #tpu.pipeline_mode<synchronous>, transform_indices = @transform_8, window_bounds = array<i64: 1, 128>}, {transform_indices = @transform_9, window_bounds = array<i64: 1, 64, 128>}]} {
    %c0_i32 = arith.constant 0 : i32
    %c8_i32 = arith.constant 8 : i32
    %0 = arith.addi %c0_i32, %c8_i32 : i32
    %c1_i32 = arith.constant 1 : i32
    scf.for %arg13 = %c0_i32 to %0 step %c1_i32  : i32 {
      %c1_i32_139 = arith.constant 1 : i32
      %441 = arith.muli %arg13, %c1_i32_139 : i32
      %c0_i32_140 = arith.constant 0 : i32
      %442 = arith.addi %c0_i32_140, %441 : i32
      %c8_i32_141 = arith.constant 8 : i32
      %443 = arith.muli %442, %c8_i32_141 : i32
      %444 = tpu.assume_multiple %443, 8 : i32
      %c0_142 = arith.constant 0 : index
      %445 = arith.index_cast %444 : i32 to index
      %c0_143 = arith.constant 0 : index
      %446 = vector.load %arg1[%c0_142, %445, %c0_143] : memref<1x64x32xf32, #tpu.memory_space<vmem>>, vector<1x8x32xf32>
      %447 = vector.shape_cast %446 : vector<1x8x32xf32> to vector<8x32xf32>
      %448 = arith.truncf %447 : vector<8x32xf32> to vector<8x32xbf16>
      %c0_144 = arith.constant 0 : index
      %c0_145 = arith.constant 0 : index
      %449 = vector.load %arg3[%c0_144, %c0_145] : memref<32x256xbf16, #tpu.memory_space<vmem>>, vector<32x256xbf16>
      %cst_146 = arith.constant dense<0.000000e+00> : vector<8x256xf32>
      %450 = tpu.matmul %448, %449, %cst_146 {dimension_numbers = #tpu.dot_dimension_numbers<[1], [0], [0], [1], [0, 0, 1, 1], [], []>} : vector<8x32xbf16>, vector<32x256xbf16>, vector<8x256xf32> -> vector<8x256xf32>
      %c0_147 = arith.constant 0 : index
      %c0_148 = arith.constant 0 : index
      %c0_149 = arith.constant 0 : index
      %451 = vector.load %arg2[%c0_147, %c0_148, %c0_149] : memref<1x8x256xf32, #tpu.memory_space<vmem>>, vector<1x8x256xf32>
      %452 = vector.shape_cast %451 : vector<1x8x256xf32> to vector<8x256xf32>
      %453 = arith.addf %450, %452 : vector<8x256xf32>
      %454 = arith.index_cast %444 : i32 to index
      %c0_150 = arith.constant 0 : index
      %455 = vector.load %arg11[%454, %c0_150] : memref<64x256xf32, #tpu.memory_space<vmem>>, vector<8x256xf32>
      tpu.vector_store %arg11[%454, %c0_150], %453 {strides = array<i32>} : memref<64x256xf32, #tpu.memory_space<vmem>>, vector<8x256xf32>,
    }
    %c8_i32_0 = arith.constant 8 : i32
    %c0 = arith.constant 0 : index
    %c0_1 = arith.constant 0 : index
    %1 = vector.load %arg6[%c0, %c0_1] : memref<64x256xbf16, #tpu.memory_space<vmem>>, vector<64x256xbf16>
    %cst = arith.constant 0.000000e+00 : bf16
    %2 = vector.broadcast %cst : bf16 to vector<8x64xbf16>
    %cst_2 = arith.constant 0.000000e+00 : f32
    %3 = vector.broadcast %cst_2 : f32 to vector<8x64xf32>
    %c0_i32_3 = arith.constant 0 : i32
    %c8_i32_4 = arith.constant 8 : i32
    %4 = arith.muli %c0_i32_3, %c8_i32_4 : i32
    %5 = tpu.assume_multiple %4, 8 : i32
    %6 = arith.index_cast %5 : i32 to index
    %c0_5 = arith.constant 0 : index
    %7 = vector.load %arg11[%6, %c0_5] : memref<64x256xf32, #tpu.memory_space<vmem>>, vector<8x256xf32>
    %cst_6 = arith.constant dense<0.000000e+00> : vector<8x256xf32>
    %8 = tpu.matmul %2, %1, %cst_6 {dimension_numbers = #tpu.dot_dimension_numbers<[1], [0], [0], [1], [0, 0, 1, 1], [], []>} : vector<8x64xbf16>, vector<64x256xbf16>, vector<8x256xf32> -> vector<8x256xf32>
    %9 = arith.addf %7, %8 : vector<8x256xf32>
    %10 = arith.negf %9 : vector<8x256xf32>
    %11 = math.exp %10 : vector<8x256xf32>
    %cst_7 = arith.constant 1.000000e+00 : f32
    %12 = vector.broadcast %cst_7 : f32 to vector<8x256xf32>
    %13 = arith.addf %12, %11 : vector<8x256xf32>
    %14 = arith.divf %12, %13 : vector<8x256xf32>
    %15 = vector.extract_strided_slice %14 {offsets = [0, 0], sizes = [8, 64], strides = [1, 1]} : vector<8x256xf32> to vector<8x64xf32>
    %16 = vector.extract_strided_slice %14 {offsets = [0, 64], sizes = [8, 64], strides = [1, 1]} : vector<8x256xf32> to vector<8x64xf32>
    %17 = vector.extract_strided_slice %14 {offsets = [0, 128], sizes = [8, 64], strides = [1, 1]} : vector<8x256xf32> to vector<8x64xf32>
    %cst_8 = arith.constant 2.000000e+00 : f32
    %18 = vector.broadcast %cst_8 : f32 to vector<8x64xf32>
    %19 = arith.mulf %18, %17 : vector<8x64xf32>
    %cst_9 = arith.constant 1.000000e+00 : f32
    %20 = vector.broadcast %cst_9 : f32 to vector<8x64xf32>
    %21 = arith.subf %19, %20 : vector<8x64xf32>
    %22 = vector.extract_strided_slice %14 {offsets = [0, 192], sizes = [8, 64], strides = [1, 1]} : vector<8x256xf32> to vector<8x64xf32>
    %23 = arith.mulf %16, %3 : vector<8x64xf32>
    %24 = arith.mulf %15, %21 : vector<8x64xf32>
    %25 = arith.addf %23, %24 : vector<8x64xf32>
    %26 = math.tanh %25 : vector<8x64xf32>
    %27 = arith.mulf %22, %26 : vector<8x64xf32>
    %28 = arith.index_cast %5 : i32 to index
    %c0_10 = arith.constant 0 : index
    %29 = vector.load %arg12[%28, %c0_10] : memref<64x64xf32, #tpu.memory_space<vmem>>, vector<8x64xf32>
    tpu.vector_store %arg12[%28, %c0_10], %27 {strides = array<i32>} : memref<64x64xf32, #tpu.memory_space<vmem>>, vector<8x64xf32>,
    %30 = arith.truncf %27 : vector<8x64xf32> to vector<8x64xbf16>
    %c1_i32_11 = arith.constant 1 : i32
    %c8_i32_12 = arith.constant 8 : i32
    %31 = arith.muli %c1_i32_11, %c8_i32_12 : i32
    %32 = tpu.assume_multiple %31, 8 : i32
    %33 = arith.index_cast %32 : i32 to index
    %c0_13 = arith.constant 0 : index
    %34 = vector.load %arg11[%33, %c0_13] : memref<64x256xf32, #tpu.memory_space<vmem>>, vector<8x256xf32>
    %cst_14 = arith.constant dense<0.000000e+00> : vector<8x256xf32>
    %35 = tpu.matmul %30, %1, %cst_14 {dimension_numbers = #tpu.dot_dimension_numbers<[1], [0], [0], [1], [0, 0, 1, 1], [], []>} : vector<8x64xbf16>, vector<64x256xbf16>, vector<8x256xf32> -> vector<8x256xf32>
    %36 = arith.addf %34, %35 : vector<8x256xf32>
    %37 = arith.negf %36 : vector<8x256xf32>
    %38 = math.exp %37 : vector<8x256xf32>
    %cst_15 = arith.constant 1.000000e+00 : f32
    %39 = vector.broadcast %cst_15 : f32 to vector<8x256xf32>
    %40 = arith.addf %39, %38 : vector<8x256xf32>
    %41 = arith.divf %39, %40 : vector<8x256xf32>
    %42 = vector.extract_strided_slice %41 {offsets = [0, 0], sizes = [8, 64], strides = [1, 1]} : vector<8x256xf32> to vector<8x64xf32>
    %43 = vector.extract_strided_slice %41 {offsets = [0, 64], sizes = [8, 64], strides = [1, 1]} : vector<8x256xf32> to vector<8x64xf32>
    %44 = vector.extract_strided_slice %41 {offsets = [0, 128], sizes = [8, 64], strides = [1, 1]} : vector<8x256xf32> to vector<8x64xf32>
    %cst_16 = arith.constant 2.000000e+00 : f32
    %45 = vector.broadcast %cst_16 : f32 to vector<8x64xf32>
    %46 = arith.mulf %45, %44 : vector<8x64xf32>
    %cst_17 = arith.constant 1.000000e+00 : f32
    %47 = vector.broadcast %cst_17 : f32 to vector<8x64xf32>
    %48 = arith.subf %46, %47 : vector<8x64xf32>
    %49 = vector.extract_strided_slice %41 {offsets = [0, 192], sizes = [8, 64], strides = [1, 1]} : vector<8x256xf32> to vector<8x64xf32>
    %50 = arith.mulf %43, %25 : vector<8x64xf32>
    %51 = arith.mulf %42, %48 : vector<8x64xf32>
    %52 = arith.addf %50, %51 : vector<8x64xf32>
    %53 = math.tanh %52 : vector<8x64xf32>
    %54 = arith.mulf %49, %53 : vector<8x64xf32>
    %55 = arith.index_cast %32 : i32 to index
    %c0_18 = arith.constant 0 : index
    %56 = vector.load %arg12[%55, %c0_18] : memref<64x64xf32, #tpu.memory_space<vmem>>, vector<8x64xf32>
    tpu.vector_store %arg12[%55, %c0_18], %54 {strides = array<i32>} : memref<64x64xf32, #tpu.memory_space<vmem>>, vector<8x64xf32>,
    %57 = arith.truncf %54 : vector<8x64xf32> to vector<8x64xbf16>
    %c2_i32 = arith.constant 2 : i32
    %c8_i32_19 = arith.constant 8 : i32
    %58 = arith.muli %c2_i32, %c8_i32_19 : i32
    %59 = tpu.assume_multiple %58, 8 : i32
    %60 = arith.index_cast %59 : i32 to index
    %c0_20 = arith.constant 0 : index
    %61 = vector.load %arg11[%60, %c0_20] : memref<64x256xf32, #tpu.memory_space<vmem>>, vector<8x256xf32>
    %cst_21 = arith.constant dense<0.000000e+00> : vector<8x256xf32>
    %62 = tpu.matmul %57, %1, %cst_21 {dimension_numbers = #tpu.dot_dimension_numbers<[1], [0], [0], [1], [0, 0, 1, 1], [], []>} : vector<8x64xbf16>, vector<64x256xbf16>, vector<8x256xf32> -> vector<8x256xf32>
    %63 = arith.addf %61, %62 : vector<8x256xf32>
    %64 = arith.negf %63 : vector<8x256xf32>
    %65 = math.exp %64 : vector<8x256xf32>
    %cst_22 = arith.constant 1.000000e+00 : f32
    %66 = vector.broadcast %cst_22 : f32 to vector<8x256xf32>
    %67 = arith.addf %66, %65 : vector<8x256xf32>
    %68 = arith.divf %66, %67 : vector<8x256xf32>
    %69 = vector.extract_strided_slice %68 {offsets = [0, 0], sizes = [8, 64], strides = [1, 1]} : vector<8x256xf32> to vector<8x64xf32>
    %70 = vector.extract_strided_slice %68 {offsets = [0, 64], sizes = [8, 64], strides = [1, 1]} : vector<8x256xf32> to vector<8x64xf32>
    %71 = vector.extract_strided_slice %68 {offsets = [0, 128], sizes = [8, 64], strides = [1, 1]} : vector<8x256xf32> to vector<8x64xf32>
    %cst_23 = arith.constant 2.000000e+00 : f32
    %72 = vector.broadcast %cst_23 : f32 to vector<8x64xf32>
    %73 = arith.mulf %72, %71 : vector<8x64xf32>
    %cst_24 = arith.constant 1.000000e+00 : f32
    %74 = vector.broadcast %cst_24 : f32 to vector<8x64xf32>
    %75 = arith.subf %73, %74 : vector<8x64xf32>
    %76 = vector.extract_strided_slice %68 {offsets = [0, 192], sizes = [8, 64], strides = [1, 1]} : vector<8x256xf32> to vector<8x64xf32>
    %77 = arith.mulf %70, %52 : vector<8x64xf32>
    %78 = arith.mulf %69, %75 : vector<8x64xf32>
    %79 = arith.addf %77, %78 : vector<8x64xf32>
    %80 = math.tanh %79 : vector<8x64xf32>
    %81 = arith.mulf %76, %80 : vector<8x64xf32>
    %82 = arith.index_cast %59 : i32 to index
    %c0_25 = arith.constant 0 : index
    %83 = vector.load %arg12[%82, %c0_25] : memref<64x64xf32, #tpu.memory_space<vmem>>, vector<8x64xf32>
    tpu.vector_store %arg12[%82, %c0_25], %81 {strides = array<i32>} : memref<64x64xf32, #tpu.memory_space<vmem>>, vector<8x64xf32>,
    %84 = arith.truncf %81 : vector<8x64xf32> to vector<8x64xbf16>
    %c3_i32 = arith.constant 3 : i32
    %c8_i32_26 = arith.constant 8 : i32
    %85 = arith.muli %c3_i32, %c8_i32_26 : i32
    %86 = tpu.assume_multiple %85, 8 : i32
    %87 = arith.index_cast %86 : i32 to index
    %c0_27 = arith.constant 0 : index
    %88 = vector.load %arg11[%87, %c0_27] : memref<64x256xf32, #tpu.memory_space<vmem>>, vector<8x256xf32>
    %cst_28 = arith.constant dense<0.000000e+00> : vector<8x256xf32>
    %89 = tpu.matmul %84, %1, %cst_28 {dimension_numbers = #tpu.dot_dimension_numbers<[1], [0], [0], [1], [0, 0, 1, 1], [], []>} : vector<8x64xbf16>, vector<64x256xbf16>, vector<8x256xf32> -> vector<8x256xf32>
    %90 = arith.addf %88, %89 : vector<8x256xf32>
    %91 = arith.negf %90 : vector<8x256xf32>
    %92 = math.exp %91 : vector<8x256xf32>
    %cst_29 = arith.constant 1.000000e+00 : f32
    %93 = vector.broadcast %cst_29 : f32 to vector<8x256xf32>
    %94 = arith.addf %93, %92 : vector<8x256xf32>
    %95 = arith.divf %93, %94 : vector<8x256xf32>
    %96 = vector.extract_strided_slice %95 {offsets = [0, 0], sizes = [8, 64], strides = [1, 1]} : vector<8x256xf32> to vector<8x64xf32>
    %97 = vector.extract_strided_slice %95 {offsets = [0, 64], sizes = [8, 64], strides = [1, 1]} : vector<8x256xf32> to vector<8x64xf32>
    %98 = vector.extract_strided_slice %95 {offsets = [0, 128], sizes = [8, 64], strides = [1, 1]} : vector<8x256xf32> to vector<8x64xf32>
    %cst_30 = arith.constant 2.000000e+00 : f32
    %99 = vector.broadcast %cst_30 : f32 to vector<8x64xf32>
    %100 = arith.mulf %99, %98 : vector<8x64xf32>
    %cst_31 = arith.constant 1.000000e+00 : f32
    %101 = vector.broadcast %cst_31 : f32 to vector<8x64xf32>
    %102 = arith.subf %100, %101 : vector<8x64xf32>
    %103 = vector.extract_strided_slice %95 {offsets = [0, 192], sizes = [8, 64], strides = [1, 1]} : vector<8x256xf32> to vector<8x64xf32>
    %104 = arith.mulf %97, %79 : vector<8x64xf32>
    %105 = arith.mulf %96, %102 : vector<8x64xf32>
    %106 = arith.addf %104, %105 : vector<8x64xf32>
    %107 = math.tanh %106 : vector<8x64xf32>
    %108 = arith.mulf %103, %107 : vector<8x64xf32>
    %109 = arith.index_cast %86 : i32 to index
    %c0_32 = arith.constant 0 : index
    %110 = vector.load %arg12[%109, %c0_32] : memref<64x64xf32, #tpu.memory_space<vmem>>, vector<8x64xf32>
    tpu.vector_store %arg12[%109, %c0_32], %108 {strides = array<i32>} : memref<64x64xf32, #tpu.memory_space<vmem>>, vector<8x64xf32>,
    %111 = arith.truncf %108 : vector<8x64xf32> to vector<8x64xbf16>
    %c4_i32 = arith.constant 4 : i32
    %c8_i32_33 = arith.constant 8 : i32
    %112 = arith.muli %c4_i32, %c8_i32_33 : i32
    %113 = tpu.assume_multiple %112, 8 : i32
    %114 = arith.index_cast %113 : i32 to index
    %c0_34 = arith.constant 0 : index
    %115 = vector.load %arg11[%114, %c0_34] : memref<64x256xf32, #tpu.memory_space<vmem>>, vector<8x256xf32>
    %cst_35 = arith.constant dense<0.000000e+00> : vector<8x256xf32>
    %116 = tpu.matmul %111, %1, %cst_35 {dimension_numbers = #tpu.dot_dimension_numbers<[1], [0], [0], [1], [0, 0, 1, 1], [], []>} : vector<8x64xbf16>, vector<64x256xbf16>, vector<8x256xf32> -> vector<8x256xf32>
    %117 = arith.addf %115, %116 : vector<8x256xf32>
    %118 = arith.negf %117 : vector<8x256xf32>
    %119 = math.exp %118 : vector<8x256xf32>
    %cst_36 = arith.constant 1.000000e+00 : f32
    %120 = vector.broadcast %cst_36 : f32 to vector<8x256xf32>
    %121 = arith.addf %120, %119 : vector<8x256xf32>
    %122 = arith.divf %120, %121 : vector<8x256xf32>
    %123 = vector.extract_strided_slice %122 {offsets = [0, 0], sizes = [8, 64], strides = [1, 1]} : vector<8x256xf32> to vector<8x64xf32>
    %124 = vector.extract_strided_slice %122 {offsets = [0, 64], sizes = [8, 64], strides = [1, 1]} : vector<8x256xf32> to vector<8x64xf32>
    %125 = vector.extract_strided_slice %122 {offsets = [0, 128], sizes = [8, 64], strides = [1, 1]} : vector<8x256xf32> to vector<8x64xf32>
    %cst_37 = arith.constant 2.000000e+00 : f32
    %126 = vector.broadcast %cst_37 : f32 to vector<8x64xf32>
    %127 = arith.mulf %126, %125 : vector<8x64xf32>
    %cst_38 = arith.constant 1.000000e+00 : f32
    %128 = vector.broadcast %cst_38 : f32 to vector<8x64xf32>
    %129 = arith.subf %127, %128 : vector<8x64xf32>
    %130 = vector.extract_strided_slice %122 {offsets = [0, 192], sizes = [8, 64], strides = [1, 1]} : vector<8x256xf32> to vector<8x64xf32>
    %131 = arith.mulf %124, %106 : vector<8x64xf32>
    %132 = arith.mulf %123, %129 : vector<8x64xf32>
    %133 = arith.addf %131, %132 : vector<8x64xf32>
    %134 = math.tanh %133 : vector<8x64xf32>
    %135 = arith.mulf %130, %134 : vector<8x64xf32>
    %136 = arith.index_cast %113 : i32 to index
    %c0_39 = arith.constant 0 : index
    %137 = vector.load %arg12[%136, %c0_39] : memref<64x64xf32, #tpu.memory_space<vmem>>, vector<8x64xf32>
    tpu.vector_store %arg12[%136, %c0_39], %135 {strides = array<i32>} : memref<64x64xf32, #tpu.memory_space<vmem>>, vector<8x64xf32>,
    %138 = arith.truncf %135 : vector<8x64xf32> to vector<8x64xbf16>
    %c5_i32 = arith.constant 5 : i32
    %c8_i32_40 = arith.constant 8 : i32
    %139 = arith.muli %c5_i32, %c8_i32_40 : i32
    %140 = tpu.assume_multiple %139, 8 : i32
    %141 = arith.index_cast %140 : i32 to index
    %c0_41 = arith.constant 0 : index
    %142 = vector.load %arg11[%141, %c0_41] : memref<64x256xf32, #tpu.memory_space<vmem>>, vector<8x256xf32>
    %cst_42 = arith.constant dense<0.000000e+00> : vector<8x256xf32>
    %143 = tpu.matmul %138, %1, %cst_42 {dimension_numbers = #tpu.dot_dimension_numbers<[1], [0], [0], [1], [0, 0, 1, 1], [], []>} : vector<8x64xbf16>, vector<64x256xbf16>, vector<8x256xf32> -> vector<8x256xf32>
    %144 = arith.addf %142, %143 : vector<8x256xf32>
    %145 = arith.negf %144 : vector<8x256xf32>
    %146 = math.exp %145 : vector<8x256xf32>
    %cst_43 = arith.constant 1.000000e+00 : f32
    %147 = vector.broadcast %cst_43 : f32 to vector<8x256xf32>
    %148 = arith.addf %147, %146 : vector<8x256xf32>
    %149 = arith.divf %147, %148 : vector<8x256xf32>
    %150 = vector.extract_strided_slice %149 {offsets = [0, 0], sizes = [8, 64], strides = [1, 1]} : vector<8x256xf32> to vector<8x64xf32>
    %151 = vector.extract_strided_slice %149 {offsets = [0, 64], sizes = [8, 64], strides = [1, 1]} : vector<8x256xf32> to vector<8x64xf32>
    %152 = vector.extract_strided_slice %149 {offsets = [0, 128], sizes = [8, 64], strides = [1, 1]} : vector<8x256xf32> to vector<8x64xf32>
    %cst_44 = arith.constant 2.000000e+00 : f32
    %153 = vector.broadcast %cst_44 : f32 to vector<8x64xf32>
    %154 = arith.mulf %153, %152 : vector<8x64xf32>
    %cst_45 = arith.constant 1.000000e+00 : f32
    %155 = vector.broadcast %cst_45 : f32 to vector<8x64xf32>
    %156 = arith.subf %154, %155 : vector<8x64xf32>
    %157 = vector.extract_strided_slice %149 {offsets = [0, 192], sizes = [8, 64], strides = [1, 1]} : vector<8x256xf32> to vector<8x64xf32>
    %158 = arith.mulf %151, %133 : vector<8x64xf32>
    %159 = arith.mulf %150, %156 : vector<8x64xf32>
    %160 = arith.addf %158, %159 : vector<8x64xf32>
    %161 = math.tanh %160 : vector<8x64xf32>
    %162 = arith.mulf %157, %161 : vector<8x64xf32>
    %163 = arith.index_cast %140 : i32 to index
    %c0_46 = arith.constant 0 : index
    %164 = vector.load %arg12[%163, %c0_46] : memref<64x64xf32, #tpu.memory_space<vmem>>, vector<8x64xf32>
    tpu.vector_store %arg12[%163, %c0_46], %162 {strides = array<i32>} : memref<64x64xf32, #tpu.memory_space<vmem>>, vector<8x64xf32>,
    %165 = arith.truncf %162 : vector<8x64xf32> to vector<8x64xbf16>
    %c6_i32 = arith.constant 6 : i32
    %c8_i32_47 = arith.constant 8 : i32
    %166 = arith.muli %c6_i32, %c8_i32_47 : i32
    %167 = tpu.assume_multiple %166, 8 : i32
    %168 = arith.index_cast %167 : i32 to index
    %c0_48 = arith.constant 0 : index
    %169 = vector.load %arg11[%168, %c0_48] : memref<64x256xf32, #tpu.memory_space<vmem>>, vector<8x256xf32>
    %cst_49 = arith.constant dense<0.000000e+00> : vector<8x256xf32>
    %170 = tpu.matmul %165, %1, %cst_49 {dimension_numbers = #tpu.dot_dimension_numbers<[1], [0], [0], [1], [0, 0, 1, 1], [], []>} : vector<8x64xbf16>, vector<64x256xbf16>, vector<8x256xf32> -> vector<8x256xf32>
    %171 = arith.addf %169, %170 : vector<8x256xf32>
    %172 = arith.negf %171 : vector<8x256xf32>
    %173 = math.exp %172 : vector<8x256xf32>
    %cst_50 = arith.constant 1.000000e+00 : f32
    %174 = vector.broadcast %cst_50 : f32 to vector<8x256xf32>
    %175 = arith.addf %174, %173 : vector<8x256xf32>
    %176 = arith.divf %174, %175 : vector<8x256xf32>
    %177 = vector.extract_strided_slice %176 {offsets = [0, 0], sizes = [8, 64], strides = [1, 1]} : vector<8x256xf32> to vector<8x64xf32>
    %178 = vector.extract_strided_slice %176 {offsets = [0, 64], sizes = [8, 64], strides = [1, 1]} : vector<8x256xf32> to vector<8x64xf32>
    %179 = vector.extract_strided_slice %176 {offsets = [0, 128], sizes = [8, 64], strides = [1, 1]} : vector<8x256xf32> to vector<8x64xf32>
    %cst_51 = arith.constant 2.000000e+00 : f32
    %180 = vector.broadcast %cst_51 : f32 to vector<8x64xf32>
    %181 = arith.mulf %180, %179 : vector<8x64xf32>
    %cst_52 = arith.constant 1.000000e+00 : f32
    %182 = vector.broadcast %cst_52 : f32 to vector<8x64xf32>
    %183 = arith.subf %181, %182 : vector<8x64xf32>
    %184 = vector.extract_strided_slice %176 {offsets = [0, 192], sizes = [8, 64], strides = [1, 1]} : vector<8x256xf32> to vector<8x64xf32>
    %185 = arith.mulf %178, %160 : vector<8x64xf32>
    %186 = arith.mulf %177, %183 : vector<8x64xf32>
    %187 = arith.addf %185, %186 : vector<8x64xf32>
    %188 = math.tanh %187 : vector<8x64xf32>
    %189 = arith.mulf %184, %188 : vector<8x64xf32>
    %190 = arith.index_cast %167 : i32 to index
    %c0_53 = arith.constant 0 : index
    %191 = vector.load %arg12[%190, %c0_53] : memref<64x64xf32, #tpu.memory_space<vmem>>, vector<8x64xf32>
    tpu.vector_store %arg12[%190, %c0_53], %189 {strides = array<i32>} : memref<64x64xf32, #tpu.memory_space<vmem>>, vector<8x64xf32>,
    %192 = arith.truncf %189 : vector<8x64xf32> to vector<8x64xbf16>
    %c7_i32 = arith.constant 7 : i32
    %c8_i32_54 = arith.constant 8 : i32
    %193 = arith.muli %c7_i32, %c8_i32_54 : i32
    %194 = tpu.assume_multiple %193, 8 : i32
    %195 = arith.index_cast %194 : i32 to index
    %c0_55 = arith.constant 0 : index
    %196 = vector.load %arg11[%195, %c0_55] : memref<64x256xf32, #tpu.memory_space<vmem>>, vector<8x256xf32>
    %cst_56 = arith.constant dense<0.000000e+00> : vector<8x256xf32>
    %197 = tpu.matmul %192, %1, %cst_56 {dimension_numbers = #tpu.dot_dimension_numbers<[1], [0], [0], [1], [0, 0, 1, 1], [], []>} : vector<8x64xbf16>, vector<64x256xbf16>, vector<8x256xf32> -> vector<8x256xf32>
    %198 = arith.addf %196, %197 : vector<8x256xf32>
    %199 = arith.negf %198 : vector<8x256xf32>
    %200 = math.exp %199 : vector<8x256xf32>
    %cst_57 = arith.constant 1.000000e+00 : f32
    %201 = vector.broadcast %cst_57 : f32 to vector<8x256xf32>
    %202 = arith.addf %201, %200 : vector<8x256xf32>
    %203 = arith.divf %201, %202 : vector<8x256xf32>
    %204 = vector.extract_strided_slice %203 {offsets = [0, 0], sizes = [8, 64], strides = [1, 1]} : vector<8x256xf32> to vector<8x64xf32>
    %205 = vector.extract_strided_slice %203 {offsets = [0, 64], sizes = [8, 64], strides = [1, 1]} : vector<8x256xf32> to vector<8x64xf32>
    %206 = vector.extract_strided_slice %203 {offsets = [0, 128], sizes = [8, 64], strides = [1, 1]} : vector<8x256xf32> to vector<8x64xf32>
    %cst_58 = arith.constant 2.000000e+00 : f32
    %207 = vector.broadcast %cst_58 : f32 to vector<8x64xf32>
    %208 = arith.mulf %207, %206 : vector<8x64xf32>
    %cst_59 = arith.constant 1.000000e+00 : f32
    %209 = vector.broadcast %cst_59 : f32 to vector<8x64xf32>
    %210 = arith.subf %208, %209 : vector<8x64xf32>
    %211 = vector.extract_strided_slice %203 {offsets = [0, 192], sizes = [8, 64], strides = [1, 1]} : vector<8x256xf32> to vector<8x64xf32>
    %212 = arith.mulf %205, %187 : vector<8x64xf32>
    %213 = arith.mulf %204, %210 : vector<8x64xf32>
    %214 = arith.addf %212, %213 : vector<8x64xf32>
    %215 = math.tanh %214 : vector<8x64xf32>
    %216 = arith.mulf %211, %215 : vector<8x64xf32>
    %217 = arith.index_cast %194 : i32 to index
    %c0_60 = arith.constant 0 : index
    %218 = vector.load %arg12[%217, %c0_60] : memref<64x64xf32, #tpu.memory_space<vmem>>, vector<8x64xf32>
    tpu.vector_store %arg12[%217, %c0_60], %216 {strides = array<i32>} : memref<64x64xf32, #tpu.memory_space<vmem>>, vector<8x64xf32>,
    %219 = arith.truncf %216 : vector<8x64xf32> to vector<8x64xbf16>
    %c8_i32_61 = arith.constant 8 : i32
    %c0_i32_62 = arith.constant 0 : i32
    %c8_i32_63 = arith.constant 8 : i32
    %220 = arith.addi %c0_i32_62, %c8_i32_63 : i32
    %c1_i32_64 = arith.constant 1 : i32
    scf.for %arg13 = %c0_i32_62 to %220 step %c1_i32_64  : i32 {
      %c1_i32_139 = arith.constant 1 : i32
      %441 = arith.muli %arg13, %c1_i32_139 : i32
      %c0_i32_140 = arith.constant 0 : i32
      %442 = arith.addi %c0_i32_140, %441 : i32
      %c8_i32_141 = arith.constant 8 : i32
      %443 = arith.muli %442, %c8_i32_141 : i32
      %444 = tpu.assume_multiple %443, 8 : i32
      %445 = arith.index_cast %444 : i32 to index
      %c0_142 = arith.constant 0 : index
      %446 = vector.load %arg12[%445, %c0_142] : memref<64x64xf32, #tpu.memory_space<vmem>>, vector<8x64xf32>
      %447 = arith.truncf %446 : vector<8x64xf32> to vector<8x64xbf16>
      %c0_143 = arith.constant 0 : index
      %c0_144 = arith.constant 0 : index
      %448 = vector.load %arg4[%c0_143, %c0_144] : memref<64x256xbf16, #tpu.memory_space<vmem>>, vector<64x256xbf16>
      %cst_145 = arith.constant dense<0.000000e+00> : vector<8x256xf32>
      %449 = tpu.matmul %447, %448, %cst_145 {dimension_numbers = #tpu.dot_dimension_numbers<[1], [0], [0], [1], [0, 0, 1, 1], [], []>} : vector<8x64xbf16>, vector<64x256xbf16>, vector<8x256xf32> -> vector<8x256xf32>
      %c0_146 = arith.constant 0 : index
      %c0_147 = arith.constant 0 : index
      %450 = vector.load %arg5[%c0_146, %c0_147] : memref<1x256xf32, #tpu.memory_space<vmem>>, vector<1x256xf32>
      %451 = vector.broadcast %450 : vector<1x256xf32> to vector<8x256xf32>
      %452 = arith.addf %449, %451 : vector<8x256xf32>
      %453 = arith.index_cast %444 : i32 to index
      %c0_148 = arith.constant 0 : index
      %454 = vector.load %arg11[%453, %c0_148] : memref<64x256xf32, #tpu.memory_space<vmem>>, vector<8x256xf32>
      tpu.vector_store %arg11[%453, %c0_148], %452 {strides = array<i32>} : memref<64x256xf32, #tpu.memory_space<vmem>>, vector<8x256xf32>,
    }
    %c8_i32_65 = arith.constant 8 : i32
    %c0_66 = arith.constant 0 : index
    %c0_67 = arith.constant 0 : index
    %221 = vector.load %arg7[%c0_66, %c0_67] : memref<64x256xbf16, #tpu.memory_space<vmem>>, vector<64x256xbf16>
    %cst_68 = arith.constant 0.000000e+00 : bf16
    %222 = vector.broadcast %cst_68 : bf16 to vector<8x64xbf16>
    %cst_69 = arith.constant 0.000000e+00 : f32
    %223 = vector.broadcast %cst_69 : f32 to vector<8x64xf32>
    %c0_i32_70 = arith.constant 0 : i32
    %c8_i32_71 = arith.constant 8 : i32
    %224 = arith.muli %c0_i32_70, %c8_i32_71 : i32
    %225 = tpu.assume_multiple %224, 8 : i32
    %226 = arith.index_cast %225 : i32 to index
    %c0_72 = arith.constant 0 : index
    %227 = vector.load %arg11[%226, %c0_72] : memref<64x256xf32, #tpu.memory_space<vmem>>, vector<8x256xf32>
    %cst_73 = arith.constant dense<0.000000e+00> : vector<8x256xf32>
    %228 = tpu.matmul %222, %221, %cst_73 {dimension_numbers = #tpu.dot_dimension_numbers<[1], [0], [0], [1], [0, 0, 1, 1], [], []>} : vector<8x64xbf16>, vector<64x256xbf16>, vector<8x256xf32> -> vector<8x256xf32>
    %229 = arith.addf %227, %228 : vector<8x256xf32>
    %230 = arith.negf %229 : vector<8x256xf32>
    %231 = math.exp %230 : vector<8x256xf32>
    %cst_74 = arith.constant 1.000000e+00 : f32
    %232 = vector.broadcast %cst_74 : f32 to vector<8x256xf32>
    %233 = arith.addf %232, %231 : vector<8x256xf32>
    %234 = arith.divf %232, %233 : vector<8x256xf32>
    %235 = vector.extract_strided_slice %234 {offsets = [0, 0], sizes = [8, 64], strides = [1, 1]} : vector<8x256xf32> to vector<8x64xf32>
    %236 = vector.extract_strided_slice %234 {offsets = [0, 64], sizes = [8, 64], strides = [1, 1]} : vector<8x256xf32> to vector<8x64xf32>
    %237 = vector.extract_strided_slice %234 {offsets = [0, 128], sizes = [8, 64], strides = [1, 1]} : vector<8x256xf32> to vector<8x64xf32>
    %cst_75 = arith.constant 2.000000e+00 : f32
    %238 = vector.broadcast %cst_75 : f32 to vector<8x64xf32>
    %239 = arith.mulf %238, %237 : vector<8x64xf32>
    %cst_76 = arith.constant 1.000000e+00 : f32
    %240 = vector.broadcast %cst_76 : f32 to vector<8x64xf32>
    %241 = arith.subf %239, %240 : vector<8x64xf32>
    %242 = vector.extract_strided_slice %234 {offsets = [0, 192], sizes = [8, 64], strides = [1, 1]} : vector<8x256xf32> to vector<8x64xf32>
    %243 = arith.mulf %236, %223 : vector<8x64xf32>
    %244 = arith.mulf %235, %241 : vector<8x64xf32>
    %245 = arith.addf %243, %244 : vector<8x64xf32>
    %246 = math.tanh %245 : vector<8x64xf32>
    %247 = arith.mulf %242, %246 : vector<8x64xf32>
    %248 = arith.index_cast %225 : i32 to index
    %c0_77 = arith.constant 0 : index
    %249 = vector.load %arg12[%248, %c0_77] : memref<64x64xf32, #tpu.memory_space<vmem>>, vector<8x64xf32>
    tpu.vector_store %arg12[%248, %c0_77], %247 {strides = array<i32>} : memref<64x64xf32, #tpu.memory_space<vmem>>, vector<8x64xf32>,
    %250 = arith.truncf %247 : vector<8x64xf32> to vector<8x64xbf16>
    %c1_i32_78 = arith.constant 1 : i32
    %c8_i32_79 = arith.constant 8 : i32
    %251 = arith.muli %c1_i32_78, %c8_i32_79 : i32
    %252 = tpu.assume_multiple %251, 8 : i32
    %253 = arith.index_cast %252 : i32 to index
    %c0_80 = arith.constant 0 : index
    %254 = vector.load %arg11[%253, %c0_80] : memref<64x256xf32, #tpu.memory_space<vmem>>, vector<8x256xf32>
    %cst_81 = arith.constant dense<0.000000e+00> : vector<8x256xf32>
    %255 = tpu.matmul %250, %221, %cst_81 {dimension_numbers = #tpu.dot_dimension_numbers<[1], [0], [0], [1], [0, 0, 1, 1], [], []>} : vector<8x64xbf16>, vector<64x256xbf16>, vector<8x256xf32> -> vector<8x256xf32>
    %256 = arith.addf %254, %255 : vector<8x256xf32>
    %257 = arith.negf %256 : vector<8x256xf32>
    %258 = math.exp %257 : vector<8x256xf32>
    %cst_82 = arith.constant 1.000000e+00 : f32
    %259 = vector.broadcast %cst_82 : f32 to vector<8x256xf32>
    %260 = arith.addf %259, %258 : vector<8x256xf32>
    %261 = arith.divf %259, %260 : vector<8x256xf32>
    %262 = vector.extract_strided_slice %261 {offsets = [0, 0], sizes = [8, 64], strides = [1, 1]} : vector<8x256xf32> to vector<8x64xf32>
    %263 = vector.extract_strided_slice %261 {offsets = [0, 64], sizes = [8, 64], strides = [1, 1]} : vector<8x256xf32> to vector<8x64xf32>
    %264 = vector.extract_strided_slice %261 {offsets = [0, 128], sizes = [8, 64], strides = [1, 1]} : vector<8x256xf32> to vector<8x64xf32>
    %cst_83 = arith.constant 2.000000e+00 : f32
    %265 = vector.broadcast %cst_83 : f32 to vector<8x64xf32>
    %266 = arith.mulf %265, %264 : vector<8x64xf32>
    %cst_84 = arith.constant 1.000000e+00 : f32
    %267 = vector.broadcast %cst_84 : f32 to vector<8x64xf32>
    %268 = arith.subf %266, %267 : vector<8x64xf32>
    %269 = vector.extract_strided_slice %261 {offsets = [0, 192], sizes = [8, 64], strides = [1, 1]} : vector<8x256xf32> to vector<8x64xf32>
    %270 = arith.mulf %263, %245 : vector<8x64xf32>
    %271 = arith.mulf %262, %268 : vector<8x64xf32>
    %272 = arith.addf %270, %271 : vector<8x64xf32>
    %273 = math.tanh %272 : vector<8x64xf32>
    %274 = arith.mulf %269, %273 : vector<8x64xf32>
    %275 = arith.index_cast %252 : i32 to index
    %c0_85 = arith.constant 0 : index
    %276 = vector.load %arg12[%275, %c0_85] : memref<64x64xf32, #tpu.memory_space<vmem>>, vector<8x64xf32>
    tpu.vector_store %arg12[%275, %c0_85], %274 {strides = array<i32>} : memref<64x64xf32, #tpu.memory_space<vmem>>, vector<8x64xf32>,
    %277 = arith.truncf %274 : vector<8x64xf32> to vector<8x64xbf16>
    %c2_i32_86 = arith.constant 2 : i32
    %c8_i32_87 = arith.constant 8 : i32
    %278 = arith.muli %c2_i32_86, %c8_i32_87 : i32
    %279 = tpu.assume_multiple %278, 8 : i32
    %280 = arith.index_cast %279 : i32 to index
    %c0_88 = arith.constant 0 : index
    %281 = vector.load %arg11[%280, %c0_88] : memref<64x256xf32, #tpu.memory_space<vmem>>, vector<8x256xf32>
    %cst_89 = arith.constant dense<0.000000e+00> : vector<8x256xf32>
    %282 = tpu.matmul %277, %221, %cst_89 {dimension_numbers = #tpu.dot_dimension_numbers<[1], [0], [0], [1], [0, 0, 1, 1], [], []>} : vector<8x64xbf16>, vector<64x256xbf16>, vector<8x256xf32> -> vector<8x256xf32>
    %283 = arith.addf %281, %282 : vector<8x256xf32>
    %284 = arith.negf %283 : vector<8x256xf32>
    %285 = math.exp %284 : vector<8x256xf32>
    %cst_90 = arith.constant 1.000000e+00 : f32
    %286 = vector.broadcast %cst_90 : f32 to vector<8x256xf32>
    %287 = arith.addf %286, %285 : vector<8x256xf32>
    %288 = arith.divf %286, %287 : vector<8x256xf32>
    %289 = vector.extract_strided_slice %288 {offsets = [0, 0], sizes = [8, 64], strides = [1, 1]} : vector<8x256xf32> to vector<8x64xf32>
    %290 = vector.extract_strided_slice %288 {offsets = [0, 64], sizes = [8, 64], strides = [1, 1]} : vector<8x256xf32> to vector<8x64xf32>
    %291 = vector.extract_strided_slice %288 {offsets = [0, 128], sizes = [8, 64], strides = [1, 1]} : vector<8x256xf32> to vector<8x64xf32>
    %cst_91 = arith.constant 2.000000e+00 : f32
    %292 = vector.broadcast %cst_91 : f32 to vector<8x64xf32>
    %293 = arith.mulf %292, %291 : vector<8x64xf32>
    %cst_92 = arith.constant 1.000000e+00 : f32
    %294 = vector.broadcast %cst_92 : f32 to vector<8x64xf32>
    %295 = arith.subf %293, %294 : vector<8x64xf32>
    %296 = vector.extract_strided_slice %288 {offsets = [0, 192], sizes = [8, 64], strides = [1, 1]} : vector<8x256xf32> to vector<8x64xf32>
    %297 = arith.mulf %290, %272 : vector<8x64xf32>
    %298 = arith.mulf %289, %295 : vector<8x64xf32>
    %299 = arith.addf %297, %298 : vector<8x64xf32>
    %300 = math.tanh %299 : vector<8x64xf32>
    %301 = arith.mulf %296, %300 : vector<8x64xf32>
    %302 = arith.index_cast %279 : i32 to index
    %c0_93 = arith.constant 0 : index
    %303 = vector.load %arg12[%302, %c0_93] : memref<64x64xf32, #tpu.memory_space<vmem>>, vector<8x64xf32>
    tpu.vector_store %arg12[%302, %c0_93], %301 {strides = array<i32>} : memref<64x64xf32, #tpu.memory_space<vmem>>, vector<8x64xf32>,
    %304 = arith.truncf %301 : vector<8x64xf32> to vector<8x64xbf16>
    %c3_i32_94 = arith.constant 3 : i32
    %c8_i32_95 = arith.constant 8 : i32
    %305 = arith.muli %c3_i32_94, %c8_i32_95 : i32
    %306 = tpu.assume_multiple %305, 8 : i32
    %307 = arith.index_cast %306 : i32 to index
    %c0_96 = arith.constant 0 : index
    %308 = vector.load %arg11[%307, %c0_96] : memref<64x256xf32, #tpu.memory_space<vmem>>, vector<8x256xf32>
    %cst_97 = arith.constant dense<0.000000e+00> : vector<8x256xf32>
    %309 = tpu.matmul %304, %221, %cst_97 {dimension_numbers = #tpu.dot_dimension_numbers<[1], [0], [0], [1], [0, 0, 1, 1], [], []>} : vector<8x64xbf16>, vector<64x256xbf16>, vector<8x256xf32> -> vector<8x256xf32>
    %310 = arith.addf %308, %309 : vector<8x256xf32>
    %311 = arith.negf %310 : vector<8x256xf32>
    %312 = math.exp %311 : vector<8x256xf32>
    %cst_98 = arith.constant 1.000000e+00 : f32
    %313 = vector.broadcast %cst_98 : f32 to vector<8x256xf32>
    %314 = arith.addf %313, %312 : vector<8x256xf32>
    %315 = arith.divf %313, %314 : vector<8x256xf32>
    %316 = vector.extract_strided_slice %315 {offsets = [0, 0], sizes = [8, 64], strides = [1, 1]} : vector<8x256xf32> to vector<8x64xf32>
    %317 = vector.extract_strided_slice %315 {offsets = [0, 64], sizes = [8, 64], strides = [1, 1]} : vector<8x256xf32> to vector<8x64xf32>
    %318 = vector.extract_strided_slice %315 {offsets = [0, 128], sizes = [8, 64], strides = [1, 1]} : vector<8x256xf32> to vector<8x64xf32>
    %cst_99 = arith.constant 2.000000e+00 : f32
    %319 = vector.broadcast %cst_99 : f32 to vector<8x64xf32>
    %320 = arith.mulf %319, %318 : vector<8x64xf32>
    %cst_100 = arith.constant 1.000000e+00 : f32
    %321 = vector.broadcast %cst_100 : f32 to vector<8x64xf32>
    %322 = arith.subf %320, %321 : vector<8x64xf32>
    %323 = vector.extract_strided_slice %315 {offsets = [0, 192], sizes = [8, 64], strides = [1, 1]} : vector<8x256xf32> to vector<8x64xf32>
    %324 = arith.mulf %317, %299 : vector<8x64xf32>
    %325 = arith.mulf %316, %322 : vector<8x64xf32>
    %326 = arith.addf %324, %325 : vector<8x64xf32>
    %327 = math.tanh %326 : vector<8x64xf32>
    %328 = arith.mulf %323, %327 : vector<8x64xf32>
    %329 = arith.index_cast %306 : i32 to index
    %c0_101 = arith.constant 0 : index
    %330 = vector.load %arg12[%329, %c0_101] : memref<64x64xf32, #tpu.memory_space<vmem>>, vector<8x64xf32>
    tpu.vector_store %arg12[%329, %c0_101], %328 {strides = array<i32>} : memref<64x64xf32, #tpu.memory_space<vmem>>, vector<8x64xf32>,
    %331 = arith.truncf %328 : vector<8x64xf32> to vector<8x64xbf16>
    %c4_i32_102 = arith.constant 4 : i32
    %c8_i32_103 = arith.constant 8 : i32
    %332 = arith.muli %c4_i32_102, %c8_i32_103 : i32
    %333 = tpu.assume_multiple %332, 8 : i32
    %334 = arith.index_cast %333 : i32 to index
    %c0_104 = arith.constant 0 : index
    %335 = vector.load %arg11[%334, %c0_104] : memref<64x256xf32, #tpu.memory_space<vmem>>, vector<8x256xf32>
    %cst_105 = arith.constant dense<0.000000e+00> : vector<8x256xf32>
    %336 = tpu.matmul %331, %221, %cst_105 {dimension_numbers = #tpu.dot_dimension_numbers<[1], [0], [0], [1], [0, 0, 1, 1], [], []>} : vector<8x64xbf16>, vector<64x256xbf16>, vector<8x256xf32> -> vector<8x256xf32>
    %337 = arith.addf %335, %336 : vector<8x256xf32>
    %338 = arith.negf %337 : vector<8x256xf32>
    %339 = math.exp %338 : vector<8x256xf32>
    %cst_106 = arith.constant 1.000000e+00 : f32
    %340 = vector.broadcast %cst_106 : f32 to vector<8x256xf32>
    %341 = arith.addf %340, %339 : vector<8x256xf32>
    %342 = arith.divf %340, %341 : vector<8x256xf32>
    %343 = vector.extract_strided_slice %342 {offsets = [0, 0], sizes = [8, 64], strides = [1, 1]} : vector<8x256xf32> to vector<8x64xf32>
    %344 = vector.extract_strided_slice %342 {offsets = [0, 64], sizes = [8, 64], strides = [1, 1]} : vector<8x256xf32> to vector<8x64xf32>
    %345 = vector.extract_strided_slice %342 {offsets = [0, 128], sizes = [8, 64], strides = [1, 1]} : vector<8x256xf32> to vector<8x64xf32>
    %cst_107 = arith.constant 2.000000e+00 : f32
    %346 = vector.broadcast %cst_107 : f32 to vector<8x64xf32>
    %347 = arith.mulf %346, %345 : vector<8x64xf32>
    %cst_108 = arith.constant 1.000000e+00 : f32
    %348 = vector.broadcast %cst_108 : f32 to vector<8x64xf32>
    %349 = arith.subf %347, %348 : vector<8x64xf32>
    %350 = vector.extract_strided_slice %342 {offsets = [0, 192], sizes = [8, 64], strides = [1, 1]} : vector<8x256xf32> to vector<8x64xf32>
    %351 = arith.mulf %344, %326 : vector<8x64xf32>
    %352 = arith.mulf %343, %349 : vector<8x64xf32>
    %353 = arith.addf %351, %352 : vector<8x64xf32>
    %354 = math.tanh %353 : vector<8x64xf32>
    %355 = arith.mulf %350, %354 : vector<8x64xf32>
    %356 = arith.index_cast %333 : i32 to index
    %c0_109 = arith.constant 0 : index
    %357 = vector.load %arg12[%356, %c0_109] : memref<64x64xf32, #tpu.memory_space<vmem>>, vector<8x64xf32>
    tpu.vector_store %arg12[%356, %c0_109], %355 {strides = array<i32>} : memref<64x64xf32, #tpu.memory_space<vmem>>, vector<8x64xf32>,
    %358 = arith.truncf %355 : vector<8x64xf32> to vector<8x64xbf16>
    %c5_i32_110 = arith.constant 5 : i32
    %c8_i32_111 = arith.constant 8 : i32
    %359 = arith.muli %c5_i32_110, %c8_i32_111 : i32
    %360 = tpu.assume_multiple %359, 8 : i32
    %361 = arith.index_cast %360 : i32 to index
    %c0_112 = arith.constant 0 : index
    %362 = vector.load %arg11[%361, %c0_112] : memref<64x256xf32, #tpu.memory_space<vmem>>, vector<8x256xf32>
    %cst_113 = arith.constant dense<0.000000e+00> : vector<8x256xf32>
    %363 = tpu.matmul %358, %221, %cst_113 {dimension_numbers = #tpu.dot_dimension_numbers<[1], [0], [0], [1], [0, 0, 1, 1], [], []>} : vector<8x64xbf16>, vector<64x256xbf16>, vector<8x256xf32> -> vector<8x256xf32>
    %364 = arith.addf %362, %363 : vector<8x256xf32>
    %365 = arith.negf %364 : vector<8x256xf32>
    %366 = math.exp %365 : vector<8x256xf32>
    %cst_114 = arith.constant 1.000000e+00 : f32
    %367 = vector.broadcast %cst_114 : f32 to vector<8x256xf32>
    %368 = arith.addf %367, %366 : vector<8x256xf32>
    %369 = arith.divf %367, %368 : vector<8x256xf32>
    %370 = vector.extract_strided_slice %369 {offsets = [0, 0], sizes = [8, 64], strides = [1, 1]} : vector<8x256xf32> to vector<8x64xf32>
    %371 = vector.extract_strided_slice %369 {offsets = [0, 64], sizes = [8, 64], strides = [1, 1]} : vector<8x256xf32> to vector<8x64xf32>
    %372 = vector.extract_strided_slice %369 {offsets = [0, 128], sizes = [8, 64], strides = [1, 1]} : vector<8x256xf32> to vector<8x64xf32>
    %cst_115 = arith.constant 2.000000e+00 : f32
    %373 = vector.broadcast %cst_115 : f32 to vector<8x64xf32>
    %374 = arith.mulf %373, %372 : vector<8x64xf32>
    %cst_116 = arith.constant 1.000000e+00 : f32
    %375 = vector.broadcast %cst_116 : f32 to vector<8x64xf32>
    %376 = arith.subf %374, %375 : vector<8x64xf32>
    %377 = vector.extract_strided_slice %369 {offsets = [0, 192], sizes = [8, 64], strides = [1, 1]} : vector<8x256xf32> to vector<8x64xf32>
    %378 = arith.mulf %371, %353 : vector<8x64xf32>
    %379 = arith.mulf %370, %376 : vector<8x64xf32>
    %380 = arith.addf %378, %379 : vector<8x64xf32>
    %381 = math.tanh %380 : vector<8x64xf32>
    %382 = arith.mulf %377, %381 : vector<8x64xf32>
    %383 = arith.index_cast %360 : i32 to index
    %c0_117 = arith.constant 0 : index
    %384 = vector.load %arg12[%383, %c0_117] : memref<64x64xf32, #tpu.memory_space<vmem>>, vector<8x64xf32>
    tpu.vector_store %arg12[%383, %c0_117], %382 {strides = array<i32>} : memref<64x64xf32, #tpu.memory_space<vmem>>, vector<8x64xf32>,
    %385 = arith.truncf %382 : vector<8x64xf32> to vector<8x64xbf16>
    %c6_i32_118 = arith.constant 6 : i32
    %c8_i32_119 = arith.constant 8 : i32
    %386 = arith.muli %c6_i32_118, %c8_i32_119 : i32
    %387 = tpu.assume_multiple %386, 8 : i32
    %388 = arith.index_cast %387 : i32 to index
    %c0_120 = arith.constant 0 : index
    %389 = vector.load %arg11[%388, %c0_120] : memref<64x256xf32, #tpu.memory_space<vmem>>, vector<8x256xf32>
    %cst_121 = arith.constant dense<0.000000e+00> : vector<8x256xf32>
    %390 = tpu.matmul %385, %221, %cst_121 {dimension_numbers = #tpu.dot_dimension_numbers<[1], [0], [0], [1], [0, 0, 1, 1], [], []>} : vector<8x64xbf16>, vector<64x256xbf16>, vector<8x256xf32> -> vector<8x256xf32>
    %391 = arith.addf %389, %390 : vector<8x256xf32>
    %392 = arith.negf %391 : vector<8x256xf32>
    %393 = math.exp %392 : vector<8x256xf32>
    %cst_122 = arith.constant 1.000000e+00 : f32
    %394 = vector.broadcast %cst_122 : f32 to vector<8x256xf32>
    %395 = arith.addf %394, %393 : vector<8x256xf32>
    %396 = arith.divf %394, %395 : vector<8x256xf32>
    %397 = vector.extract_strided_slice %396 {offsets = [0, 0], sizes = [8, 64], strides = [1, 1]} : vector<8x256xf32> to vector<8x64xf32>
    %398 = vector.extract_strided_slice %396 {offsets = [0, 64], sizes = [8, 64], strides = [1, 1]} : vector<8x256xf32> to vector<8x64xf32>
    %399 = vector.extract_strided_slice %396 {offsets = [0, 128], sizes = [8, 64], strides = [1, 1]} : vector<8x256xf32> to vector<8x64xf32>
    %cst_123 = arith.constant 2.000000e+00 : f32
    %400 = vector.broadcast %cst_123 : f32 to vector<8x64xf32>
    %401 = arith.mulf %400, %399 : vector<8x64xf32>
    %cst_124 = arith.constant 1.000000e+00 : f32
    %402 = vector.broadcast %cst_124 : f32 to vector<8x64xf32>
    %403 = arith.subf %401, %402 : vector<8x64xf32>
    %404 = vector.extract_strided_slice %396 {offsets = [0, 192], sizes = [8, 64], strides = [1, 1]} : vector<8x256xf32> to vector<8x64xf32>
    %405 = arith.mulf %398, %380 : vector<8x64xf32>
    %406 = arith.mulf %397, %403 : vector<8x64xf32>
    %407 = arith.addf %405, %406 : vector<8x64xf32>
    %408 = math.tanh %407 : vector<8x64xf32>
    %409 = arith.mulf %404, %408 : vector<8x64xf32>
    %410 = arith.index_cast %387 : i32 to index
    %c0_125 = arith.constant 0 : index
    %411 = vector.load %arg12[%410, %c0_125] : memref<64x64xf32, #tpu.memory_space<vmem>>, vector<8x64xf32>
    tpu.vector_store %arg12[%410, %c0_125], %409 {strides = array<i32>} : memref<64x64xf32, #tpu.memory_space<vmem>>, vector<8x64xf32>,
    %412 = arith.truncf %409 : vector<8x64xf32> to vector<8x64xbf16>
    %c7_i32_126 = arith.constant 7 : i32
    %c8_i32_127 = arith.constant 8 : i32
    %413 = arith.muli %c7_i32_126, %c8_i32_127 : i32
    %414 = tpu.assume_multiple %413, 8 : i32
    %415 = arith.index_cast %414 : i32 to index
    %c0_128 = arith.constant 0 : index
    %416 = vector.load %arg11[%415, %c0_128] : memref<64x256xf32, #tpu.memory_space<vmem>>, vector<8x256xf32>
    %cst_129 = arith.constant dense<0.000000e+00> : vector<8x256xf32>
    %417 = tpu.matmul %412, %221, %cst_129 {dimension_numbers = #tpu.dot_dimension_numbers<[1], [0], [0], [1], [0, 0, 1, 1], [], []>} : vector<8x64xbf16>, vector<64x256xbf16>, vector<8x256xf32> -> vector<8x256xf32>
    %418 = arith.addf %416, %417 : vector<8x256xf32>
    %419 = arith.negf %418 : vector<8x256xf32>
    %420 = math.exp %419 : vector<8x256xf32>
    %cst_130 = arith.constant 1.000000e+00 : f32
    %421 = vector.broadcast %cst_130 : f32 to vector<8x256xf32>
    %422 = arith.addf %421, %420 : vector<8x256xf32>
    %423 = arith.divf %421, %422 : vector<8x256xf32>
    %424 = vector.extract_strided_slice %423 {offsets = [0, 0], sizes = [8, 64], strides = [1, 1]} : vector<8x256xf32> to vector<8x64xf32>
    %425 = vector.extract_strided_slice %423 {offsets = [0, 64], sizes = [8, 64], strides = [1, 1]} : vector<8x256xf32> to vector<8x64xf32>
    %426 = vector.extract_strided_slice %423 {offsets = [0, 128], sizes = [8, 64], strides = [1, 1]} : vector<8x256xf32> to vector<8x64xf32>
    %cst_131 = arith.constant 2.000000e+00 : f32
    %427 = vector.broadcast %cst_131 : f32 to vector<8x64xf32>
    %428 = arith.mulf %427, %426 : vector<8x64xf32>
    %cst_132 = arith.constant 1.000000e+00 : f32
    %429 = vector.broadcast %cst_132 : f32 to vector<8x64xf32>
    %430 = arith.subf %428, %429 : vector<8x64xf32>
    %431 = vector.extract_strided_slice %423 {offsets = [0, 192], sizes = [8, 64], strides = [1, 1]} : vector<8x256xf32> to vector<8x64xf32>
    %432 = arith.mulf %425, %407 : vector<8x64xf32>
    %433 = arith.mulf %424, %430 : vector<8x64xf32>
    %434 = arith.addf %432, %433 : vector<8x64xf32>
    %435 = math.tanh %434 : vector<8x64xf32>
    %436 = arith.mulf %431, %435 : vector<8x64xf32>
    %437 = arith.index_cast %414 : i32 to index
    %c0_133 = arith.constant 0 : index
    %438 = vector.load %arg12[%437, %c0_133] : memref<64x64xf32, #tpu.memory_space<vmem>>, vector<8x64xf32>
    tpu.vector_store %arg12[%437, %c0_133], %436 {strides = array<i32>} : memref<64x64xf32, #tpu.memory_space<vmem>>, vector<8x64xf32>,
    %439 = arith.truncf %436 : vector<8x64xf32> to vector<8x64xbf16>
    %c8_i32_134 = arith.constant 8 : i32
    %c0_i32_135 = arith.constant 0 : i32
    %c8_i32_136 = arith.constant 8 : i32
    %440 = arith.addi %c0_i32_135, %c8_i32_136 : i32
    %c1_i32_137 = arith.constant 1 : i32
    scf.for %arg13 = %c0_i32_135 to %440 step %c1_i32_137  : i32 {
      %c1_i32_139 = arith.constant 1 : i32
      %441 = arith.muli %arg13, %c1_i32_139 : i32
      %c0_i32_140 = arith.constant 0 : i32
      %442 = arith.addi %c0_i32_140, %441 : i32
      %c8_i32_141 = arith.constant 8 : i32
      %443 = arith.muli %442, %c8_i32_141 : i32
      %444 = tpu.assume_multiple %443, 8 : i32
      %445 = arith.index_cast %444 : i32 to index
      %c0_142 = arith.constant 0 : index
      %446 = vector.load %arg12[%445, %c0_142] : memref<64x64xf32, #tpu.memory_space<vmem>>, vector<8x64xf32>
      %447 = arith.truncf %446 : vector<8x64xf32> to vector<8x64xbf16>
      %c0_143 = arith.constant 0 : index
      %c0_144 = arith.constant 0 : index
      %448 = vector.load %arg8[%c0_143, %c0_144] : memref<64x128xbf16, #tpu.memory_space<vmem>>, vector<64x128xbf16>
      %cst_145 = arith.constant dense<0.000000e+00> : vector<8x128xf32>
      %449 = tpu.matmul %447, %448, %cst_145 {dimension_numbers = #tpu.dot_dimension_numbers<[1], [0], [0], [1], [0, 0, 1, 1], [], []>} : vector<8x64xbf16>, vector<64x128xbf16>, vector<8x128xf32> -> vector<8x128xf32>
      %c0_146 = arith.constant 0 : index
      %c0_147 = arith.constant 0 : index
      %450 = vector.load %arg9[%c0_146, %c0_147] : memref<1x128xf32, #tpu.memory_space<vmem>>, vector<1x128xf32>
      %451 = vector.broadcast %450 : vector<1x128xf32> to vector<8x128xf32>
      %452 = arith.addf %449, %451 : vector<8x128xf32>
      %cst_148 = arith.constant dense<0xFF800000> : vector<8xf32>
      %453 = vector.multi_reduction <maximumf>, %452, %cst_148 [1] : vector<8x128xf32> to vector<8xf32>
      %454 = vector.shape_cast %453 : vector<8xf32> to vector<8x1xf32>
      %455 = vector.broadcast %454 : vector<8x1xf32> to vector<8x128xf32>
      %456 = arith.subf %452, %455 : vector<8x128xf32>
      %457 = math.exp %456 : vector<8x128xf32>
      %cst_149 = arith.constant dense<0.000000e+00> : vector<8xf32>
      %458 = vector.multi_reduction <add>, %457, %cst_149 [1] : vector<8x128xf32> to vector<8xf32>
      %459 = vector.shape_cast %458 : vector<8xf32> to vector<8x1xf32>
      %460 = vector.broadcast %459 : vector<8x1xf32> to vector<8x128xf32>
      %461 = arith.divf %457, %460 : vector<8x128xf32>
      %c0_150 = arith.constant 0 : index
      %462 = arith.index_cast %444 : i32 to index
      %c0_151 = arith.constant 0 : index
      %463 = vector.load %arg10[%c0_150, %462, %c0_151] : memref<1x64x128xf32, #tpu.memory_space<vmem>>, vector<1x8x128xf32>
      %464 = vector.shape_cast %463 : vector<1x8x128xf32> to vector<8x128xf32>
      %465 = vector.shape_cast %461 : vector<8x128xf32> to vector<1x8x128xf32>
      tpu.vector_store %arg10[%c0_150, %462, %c0_151], %465 {strides = array<i32>} : memref<1x64x128xf32, #tpu.memory_space<vmem>>, vector<1x8x128xf32>,
    }
    %c8_i32_138 = arith.constant 8 : i32
    return
  }
  func.func @transform_0(%arg0: i32) -> (i32, i32, i32) {
    %c0_i32 = arith.constant 0 : i32
    %c0_i32_0 = arith.constant 0 : i32
    %c0_i32_1 = arith.constant 0 : i32
    return %arg0, %c0_i32, %c0_i32_0 : i32, i32, i32
  }
  func.func @transform_1(%arg0: i32) -> (i32, i32, i32) {
    %c0_i32 = arith.constant 0 : i32
    %c0_i32_0 = arith.constant 0 : i32
    %c0_i32_1 = arith.constant 0 : i32
    return %arg0, %c0_i32, %c0_i32_0 : i32, i32, i32
  }
  func.func @transform_2(%arg0: i32) -> (i32, i32) {
    %c0_i32 = arith.constant 0 : i32
    %c0_i32_0 = arith.constant 0 : i32
    %c0_i32_1 = arith.constant 0 : i32
    return %c0_i32, %c0_i32_0 : i32, i32
  }
  func.func @transform_3(%arg0: i32) -> (i32, i32) {
    %c0_i32 = arith.constant 0 : i32
    %c0_i32_0 = arith.constant 0 : i32
    %c0_i32_1 = arith.constant 0 : i32
    return %c0_i32, %c0_i32_0 : i32, i32
  }
  func.func @transform_4(%arg0: i32) -> (i32, i32) {
    %c0_i32 = arith.constant 0 : i32
    %c0_i32_0 = arith.constant 0 : i32
    %c0_i32_1 = arith.constant 0 : i32
    return %c0_i32, %c0_i32_0 : i32, i32
  }
  func.func @transform_5(%arg0: i32) -> (i32, i32) {
    %c0_i32 = arith.constant 0 : i32
    %c0_i32_0 = arith.constant 0 : i32
    %c0_i32_1 = arith.constant 0 : i32
    return %c0_i32, %c0_i32_0 : i32, i32
  }
  func.func @transform_6(%arg0: i32) -> (i32, i32) {
    %c0_i32 = arith.constant 0 : i32
    %c0_i32_0 = arith.constant 0 : i32
    %c0_i32_1 = arith.constant 0 : i32
    return %c0_i32, %c0_i32_0 : i32, i32
  }
  func.func @transform_7(%arg0: i32) -> (i32, i32) {
    %c0_i32 = arith.constant 0 : i32
    %c0_i32_0 = arith.constant 0 : i32
    %c0_i32_1 = arith.constant 0 : i32
    return %c0_i32, %c0_i32_0 : i32, i32
  }
  func.func @transform_8(%arg0: i32) -> (i32, i32) {
    %c0_i32 = arith.constant 0 : i32
    %c0_i32_0 = arith.constant 0 : i32
    %c0_i32_1 = arith.constant 0 : i32
    return %c0_i32, %c0_i32_0 : i32, i32
  }
  func.func @transform_9(%arg0: i32) -> (i32, i32, i32) {
    %c0_i32 = arith.constant 0 : i32
    %c0_i32_0 = arith.constant 0 : i32
    %c0_i32_1 = arith.constant 0 : i32
    return %arg0, %c0_i32, %c0_i32_0 : i32, i32, i32
  }
}

</mosaic_0001>

<llo_original>
// kernel: tpu_custom_call.1
$region0: #{tpu_custom_call.1}
  #allocation0 [shape = 'u32[]', space=smem, size = 0x4, offset = 0x4, fixed_abs, tag = 'smem constant byte address 0x4 - core index']
  #allocation1 [shape = 'u32[144,128]{1,0:T(1,128)}', space=vmem, size = 0x12000, scoped, tag = 'internal scratch']
  #allocation2 [shape = 'f32[64,256]{1,0:T(8,128)}', space=vmem, size = 0x10000, scoped, tag = 'scratch operand']
  #allocation3 [shape = 'f32[64,64]{1,0:T(8,128)}', space=vmem, size = 0x8000, scoped, tag = 'scratch operand']
  %s0 = inlined_call_operand.vmem [shape: f32[1,64,32], index: 0, kind: input, shape index: {}]
  %s1 = inlined_call_operand.hbm [shape: f32[1,8,256], index: 1, kind: input, shape index: {}]
  %s2 = inlined_call_operand.vmem [shape: bf16[32,256], index: 2, kind: input, shape index: {}]
  %s3 = inlined_call_operand.vmem [shape: bf16[64,256], index: 3, kind: input, shape index: {}]
  %s4 = inlined_call_operand.vmem [shape: f32[1,256], index: 4, kind: input, shape index: {}]
  %s5 = inlined_call_operand.hbm [shape: bf16[64,256], index: 5, kind: input, shape index: {}]
  %s6 = inlined_call_operand.hbm [shape: bf16[64,256], index: 6, kind: input, shape index: {}]
  %s7 = inlined_call_operand.hbm [shape: bf16[64,128], index: 7, kind: input, shape index: {}]
  %s8 = inlined_call_operand.vmem [shape: f32[1,128], index: 8, kind: input, shape index: {}]
  %s9 = inlined_call_operand.hbm [shape: f32[1,64,128], index: 9, kind: output, shape index: {}]
  %s10 = sld [smem:[#allocation0]]
  $region83: #{tpu_custom_call.1} parent=0
    _
  %s12 = ssub.s32 1, %s10
  %s13 = scalar_select 0, %s12, %s10
  $region1: #{tpu_custom_call.1} parent=0
    #allocation4 [shape = 'u8[8192]{0}', space=vmem, size = 0x2000, scoped, tag = 'input window, operand 1, single buffered']
    #allocation5 [shape = 's32[1]{0}', space=sflag, size = 0x4, scoped, tag = 'scoped memory for tpu_custom_call.1']
    #allocation6 [shape = 's32[1]{0}', space=sflag, size = 0x4, scoped, tag = 'scoped memory for tpu_custom_call.1']
    #allocation7 [shape = 'u8[32768]{0}', space=vmem, size = 0x8000, scoped, tag = 'input window, operand 5, single buffered']
    #allocation8 [shape = 's32[1]{0}', space=sflag, size = 0x4, scoped, tag = 'scoped memory for tpu_custom_call.1']
    #allocation9 [shape = 'u8[32768]{0}', space=vmem, size = 0x8000, scoped, tag = 'input window, operand 6, single buffered']
    #allocation10 [shape = 'u8[16384]{0}', space=vmem, size = 0x4000, scoped, tag = 'input window, operand 7, single buffered']
    #allocation11 [shape = 's32[1]{0}', space=sflag, size = 0x4, scoped, tag = 'scoped memory for tpu_custom_call.1']
    #allocation12 [shape = 'u8[32768]{0}', space=vmem, size = 0x8000, scoped, tag = 'output window, operand 0, single buffered']
    %14 = vsyncpa [#allocation5], 0
    %15 = vsyncpa [#allocation8], 0
    %16 = vsyncpa [#allocation11], 0
    %17 = vsyncpa [#allocation6], 0
    // Predicated region
    $region2: #{tpu_custom_call.1} parent=1 // pred_check
      _
    $region3: #{tpu_custom_call.1} parent=1 // pred_check_branch
      %19 = sbr.rel (0) target = $region5
    $region4: #{tpu_custom_call.1} parent=1 // pred_region
      _
    $region5: #{tpu_custom_call.1} parent=1 // pred_fallthru
      _
    // Predicated region
    $region6: #{tpu_custom_call.1} parent=1 // pred_check
      _
    $region7: #{tpu_custom_call.1} parent=1 // pred_check_branch
      %21 = sbr.rel (0) target = $region9
    $region8: #{tpu_custom_call.1} parent=1 // pred_region
      %s23 = ssub.s32 256, 256
      %24 = vsyncadd [#allocation5], %s23
      %s26 = sshll.u32 [#allocation4], 4
      %s27 = int_to_ptr.vmem [resolvable:$true] %s26
      %29 = dma.hbm_to_vmem [thread:$0]  %s1, 256, %s27, [#allocation5]
    $region9: #{tpu_custom_call.1} parent=1 // pred_fallthru
      _
    // Predicated region
    $region10: #{tpu_custom_call.1} parent=1 // pred_check
      _
    $region11: #{tpu_custom_call.1} parent=1 // pred_check_branch
      %31 = sbr.rel (0) target = $region13
    $region12: #{tpu_custom_call.1} parent=1 // pred_region
      _
    $region13: #{tpu_custom_call.1} parent=1 // pred_fallthru
      _
    // Predicated region
    $region14: #{tpu_custom_call.1} parent=1 // pred_check
      _
    $region15: #{tpu_custom_call.1} parent=1 // pred_check_branch
      %33 = sbr.rel (0) target = $region17
    $region16: #{tpu_custom_call.1} parent=1 // pred_region
      _
    $region17: #{tpu_custom_call.1} parent=1 // pred_fallthru
      _
    // Predicated region
    $region18: #{tpu_custom_call.1} parent=1 // pred_check
      _
    $region19: #{tpu_custom_call.1} parent=1 // pred_check_branch
      %35 = sbr.rel (0) target = $region21
    $region20: #{tpu_custom_call.1} parent=1 // pred_region
      _
    $region21: #{tpu_custom_call.1} parent=1 // pred_fallthru
      _
    // Predicated region
    $region22: #{tpu_custom_call.1} parent=1 // pred_check
      _
    $region23: #{tpu_custom_call.1} parent=1 // pred_check_branch
      %37 = sbr.rel (0) target = $region25
    $region24: #{tpu_custom_call.1} parent=1 // pred_region
      %s39 = ssub.s32 1024, 1024
      %40 = vsyncadd [#allocation8], %s39
      %s41 = sshll.u32 [#allocation7], 4
      %s42 = int_to_ptr.vmem [resolvable:$true] %s41
      %47 = dma.hbm_to_vmem [thread:$0]  %s5, 1024, %s42, [#allocation8], 128, 128, 8
    $region25: #{tpu_custom_call.1} parent=1 // pred_fallthru
      _
    // Predicated region
    $region26: #{tpu_custom_call.1} parent=1 // pred_check
      _
    $region27: #{tpu_custom_call.1} parent=1 // pred_check_branch
      %49 = sbr.rel (0) target = $region29
    $region28: #{tpu_custom_call.1} parent=1 // pred_region
      %s51 = ssub.s32 1024, 1024
      %52 = vsyncadd [#allocation8], %s51
      %s53 = sshll.u32 [#allocation9], 4
      %s54 = int_to_ptr.vmem [resolvable:$true] %s53
      %59 = dma.hbm_to_vmem [thread:$0]  %s6, 1024, %s54, [#allocation8], 128, 128, 8
    $region29: #{tpu_custom_call.1} parent=1 // pred_fallthru
      _
    // Predicated region
    $region30: #{tpu_custom_call.1} parent=1 // pred_check
      _
    $region31: #{tpu_custom_call.1} parent=1 // pred_check_branch
      %61 = sbr.rel (0) target = $region33
    $region32: #{tpu_custom_call.1} parent=1 // pred_region
      %s63 = ssub.s32 512, 512
      %64 = vsyncadd [#allocation11], %s63
      %s65 = sshll.u32 [#allocation10], 4
      %s66 = int_to_ptr.vmem [resolvable:$true] %s65
      %71 = dma.hbm_to_vmem [thread:$0]  %s7, 512, %s66, [#allocation11], 64, 64, 4
    $region33: #{tpu_custom_call.1} parent=1 // pred_fallthru
      _
    // Predicated region
    $region34: #{tpu_custom_call.1} parent=1 // pred_check
      _
    $region35: #{tpu_custom_call.1} parent=1 // pred_check_branch
      %73 = sbr.rel (0) target = $region37
    $region36: #{tpu_custom_call.1} parent=1 // pred_region
      _
    $region37: #{tpu_custom_call.1} parent=1 // pred_fallthru
      _
    // Predicated region
    $region38: #{tpu_custom_call.1} parent=1 // pred_check
      _
    $region39: #{tpu_custom_call.1} parent=1 // pred_check_branch
      %75 = sbr.rel (0) target = $region41
    $region40: #{tpu_custom_call.1} parent=1 // pred_region
      %76 = dma.done [#allocation5], 256
    $region41: #{tpu_custom_call.1} parent=1 // pred_fallthru
      _
    // Predicated region
    $region42: #{tpu_custom_call.1} parent=1 // pred_check
      _
    $region43: #{tpu_custom_call.1} parent=1 // pred_check_branch
      %78 = sbr.rel (0) target = $region45
    $region44: #{tpu_custom_call.1} parent=1 // pred_region
      %79 = dma.done [#allocation8], 1024
    $region45: #{tpu_custom_call.1} parent=1 // pred_fallthru
      _
    // Predicated region
    $region46: #{tpu_custom_call.1} parent=1 // pred_check
      _
    $region47: #{tpu_custom_call.1} parent=1 // pred_check_branch
      %81 = sbr.rel (0) target = $region49
    $region48: #{tpu_custom_call.1} parent=1 // pred_region
      %82 = dma.done [#allocation8], 1024
    $region49: #{tpu_custom_call.1} parent=1 // pred_fallthru
      _
    // Predicated region
    $region50: #{tpu_custom_call.1} parent=1 // pred_check
      _
    $region51: #{tpu_custom_call.1} parent=1 // pred_check_branch
      %84 = sbr.rel (0) target = $region53
    $region52: #{tpu_custom_call.1} parent=1 // pred_region
      %85 = dma.done [#allocation11], 512
    $region53: #{tpu_custom_call.1} parent=1 // pred_fallthru
      _
    loop: start=0, step=1, limit=8
    $region54: #{tpu_custom_call.1} parent=1 // loop_pre_header
      _
    $region55: #{tpu_custom_call.1} parent=1 // loop_header
      %s88 = sphi 0, %s92
      %p89 = scmp.ge.s32.totalorder %s88, 8
    $region56: #{tpu_custom_call.1} parent=1 // loop_header_branch
      %91 = sbr.rel (%p89) target = $region60
    $region57: #{tpu_custom_call.1} parent=1 // loop_body
      %s93 = smul.u32 %s88, 8
      %s94 = scalar_lea.vmem %s0, %s93
      %v95 = vld [vmem:[%s94] sm:$0xff]
      %v96 = vpack.c.bf16 %v95, %v95
      %v97 = vld [vmem:[%s2] sm:$0xff]
      %v98 = vld [vmem:[%s2 + $0x8] sm:$0xff]
      %v99 = vld [vmem:[%s2 + $0x10] sm:$0xff]
      %v100 = vld [vmem:[%s2 + $0x18] sm:$0xff]
      %v101 = vld [vmem:[#allocation4] sm:$0xff]
      %v102 = vld [vmem:[#allocation4 + $0x8] sm:$0xff]
      %v107 = vunpack.c.l.b16 %v97
      %v108 = vunpack.c.h.b16 %v97
      %v109 = vunpack.c.l.b16 %v98
      %v110 = vunpack.c.h.b16 %v98
      %v111 = vunpack.c.l.b16 %v99
      %v112 = vunpack.c.h.b16 %v99
      %v113 = vunpack.c.l.b16 %v100
      %v114 = vunpack.c.h.b16 %v100
      %v115 = vpack.c.b16 %v109, %v107
      %v116 = vpack.c.b16 %v110, %v108
      %v117 = vpack.c.b16 %v113, %v111
      %v118 = vpack.c.b16 %v114, %v112
      %vm123 = vcmask 261120
      %v125 = vsel %vm123, %v96, 0
      %127 = vmatprep.subr.bf16.mxu0 %v116
      %128 = vmatpush1.bf16.msra.mxu0 %v115
      %129 = vmatprep.subr.bf16.mxu0 %v118
      %130 = vmatpush1.bf16.msra.mxu0 %v117
      %131 = vmatprep.subr.bf16.mxu0 0
      %132 = vmatpush1.bf16.msra.mxu0 0
      %133 = vmatprep.subr.bf16.mxu0 0
      %134 = vmatpush1.bf16.msra.mxu0 0
      %135 = vmatprep.subr.bf16.mxu0 0
      %136 = vmatpush1.bf16.msra.mxu0 0
      %137 = vmatprep.subr.bf16.mxu0 0
      %138 = vmatpush1.bf16.msra.mxu0 0
      %139 = vmatprep.subr.bf16.mxu0 0
      %140 = vmatpush1.bf16.msra.mxu0 0
      %141 = vmatprep.subr.bf16.mxu0 0
      %142 = vmatpush1.bf16.msra.mxu0 0
      %143 = vmatprep.subr.bf16.mxu0 0
      %144 = vmatpush1.bf16.msra.mxu0 0
      %145 = vmatprep.subr.bf16.mxu0 0
      %146 = vmatpush1.bf16.msra.mxu0 0
      %147 = vmatprep.subr.bf16.mxu0 0
      %148 = vmatpush1.bf16.msra.mxu0 0
      %149 = vmatprep.subr.bf16.mxu0 0
      %150 = vmatpush1.bf16.msra.mxu0 0
      %151 = vmatprep.subr.bf16.mxu0 0
      %152 = vmatpush1.bf16.msra.mxu0 0
      %153 = vmatprep.subr.bf16.mxu0 0
      %154 = vmatpush1.bf16.msra.mxu0 0
      %155 = vmatprep.subr.bf16.mxu0 0
      %156 = vmatpush1.bf16.msra.mxu0 0
      %157 = vmatprep.subr.bf16.mxu0 0
      %158 = vmatpush1.bf16.msra.mxu0 0
      %159 = vmatprep.mubr.bf16.mxu0 0
      %160 = vmatmul.mubr.bf16.gmra.mrb[0].mxu0 %v125
      %v161 = vpop.f32.mrb[0].mxu0
      %v162 = vadd.f32 %v101, %v161
      %v163 = vpop.f32.mrb[0].mxu0
      %v164 = vadd.f32 %v102, %v163
      %v165 = vpop.f32.mrb[0].mxu0
      %v166 = vpop.f32.mrb[0].mxu0
      %167 = vdwg.mxu0
      %s168 = sshra.s32 %s93, 3
      %s169 = sand.u32 %s93, 7
      %s170 = smul.u32 %s168, 2
      %s171 = smul.addr %s170, 8
      %s172 = scalar_lea.vmem [#allocation2], %s171
      %173 = vst [vmem:[%s172] sm:$0xff] %v162
      %174 = vst [vmem:[%s172 + $0x8] sm:$0xff] %v164
    $region58: #{tpu_custom_call.1} parent=1 // loop_footer
      %s92 = sadd.s32 1, %s88
    $region59: #{tpu_custom_call.1} parent=1 // loop_footer_branch
      %87 = sbr.rel target = $region55
    $region60: #{tpu_custom_call.1} parent=1 // loop_exit
      _
    %v175 = vld [vmem:[#allocation7] sm:$0xff]
    %v176 = vld [vmem:[#allocation7 + $0x8] sm:$0xff]
    %v177 = vld [vmem:[#allocation7 + $0x10] sm:$0xff]
    %v178 = vld [vmem:[#allocation7 + $0x18] sm:$0xff]
    %v179 = vld [vmem:[#allocation7 + $0x20] sm:$0xff]
    %v180 = vld [vmem:[#allocation7 + $0x28] sm:$0xff]
    %v181 = vld [vmem:[#allocation7 + $0x30] sm:$0xff]
    %v182 = vld [vmem:[#allocation7 + $0x38] sm:$0xff]
    %s183 = smul.u32 0, 2
    %s184 = smul.addr %s183, 8
    %s185 = scalar_lea.vmem [#allocation2], %s184
    %v186 = vld [vmem:[%s185] sm:$0xff]
    %v187 = vld [vmem:[%s185 + $0x8] sm:$0xff]
    %v196 = vunpack.c.l.b16 %v175
    %v197 = vunpack.c.h.b16 %v175
    %v198 = vunpack.c.l.b16 %v176
    %v199 = vunpack.c.h.b16 %v176
    %v200 = vunpack.c.l.b16 %v177
    %v201 = vunpack.c.h.b16 %v177
    %v202 = vunpack.c.l.b16 %v178
    %v203 = vunpack.c.h.b16 %v178
    %v204 = vunpack.c.l.b16 %v179
    %v205 = vunpack.c.h.b16 %v179
    %v206 = vunpack.c.l.b16 %v180
    %v207 = vunpack.c.h.b16 %v180
    %v208 = vunpack.c.l.b16 %v181
    %v209 = vunpack.c.h.b16 %v181
    %v210 = vunpack.c.l.b16 %v182
    %v211 = vunpack.c.h.b16 %v182
    %v212 = vpack.c.b16 %v198, %v196
    %v213 = vpack.c.b16 %v199, %v197
    %v214 = vpack.c.b16 %v202, %v200
    %v215 = vpack.c.b16 %v203, %v201
    %v216 = vpack.c.b16 %v206, %v204
    %v217 = vpack.c.b16 %v207, %v205
    %v218 = vpack.c.b16 %v210, %v208
    %v219 = vpack.c.b16 %v211, %v209
    %vm228 = vcmask 523264
    %v230 = vsel %vm228, 0, 0
    %232 = vmatprep.subr.bf16.mxu0 %v213
    %233 = vmatpush1.bf16.msra.mxu0 %v212
    %234 = vmatprep.subr.bf16.mxu0 %v215
    %235 = vmatpush1.bf16.msra.mxu0 %v214
    %236 = vmatprep.subr.bf16.mxu0 %v217
    %237 = vmatpush1.bf16.msra.mxu0 %v216
    %238 = vmatprep.subr.bf16.mxu0 %v219
    %239 = vmatpush1.bf16.msra.mxu0 %v218
    %240 = vmatprep.subr.bf16.mxu0 0
    %241 = vmatpush1.bf16.msra.mxu0 0
    %242 = vmatprep.subr.bf16.mxu0 0
    %243 = vmatpush1.bf16.msra.mxu0 0
    %244 = vmatprep.subr.bf16.mxu0 0
    %245 = vmatpush1.bf16.msra.mxu0 0
    %246 = vmatprep.subr.bf16.mxu0 0
    %247 = vmatpush1.bf16.msra.mxu0 0
    %248 = vmatprep.subr.bf16.mxu0 0
    %249 = vmatpush1.bf16.msra.mxu0 0
    %250 = vmatprep.subr.bf16.mxu0 0
    %251 = vmatpush1.bf16.msra.mxu0 0
    %252 = vmatprep.subr.bf16.mxu0 0
    %253 = vmatpush1.bf16.msra.mxu0 0
    %254 = vmatprep.subr.bf16.mxu0 0
    %255 = vmatpush1.bf16.msra.mxu0 0
    %256 = vmatprep.subr.bf16.mxu0 0
    %257 = vmatpush1.bf16.msra.mxu0 0
    %258 = vmatprep.subr.bf16.mxu0 0
    %259 = vmatpush1.bf16.msra.mxu0 0
    %260 = vmatprep.subr.bf16.mxu0 0
    %261 = vmatpush1.bf16.msra.mxu0 0
    %262 = vmatprep.subr.bf16.mxu0 0
    %263 = vmatpush1.bf16.msra.mxu0 0
    %264 = vmatprep.mubr.bf16.mxu0 0
    %265 = vmatmul.mubr.bf16.gmra.mrb[0].mxu0 %v230
    %v266 = vpop.f32.mrb[0].mxu0
    %v267 = vadd.f32 0.0, %v266
    %v268 = vpop.f32.mrb[0].mxu0
    %v269 = vadd.f32 0.0, %v268
    %v270 = vpop.f32.mrb[0].mxu0
    %v271 = vpop.f32.mrb[0].mxu0
    %272 = vdwg.mxu0
    %v273 = vadd.f32 %v186, %v267
    %v274 = vadd.f32 %v187, %v269
    %v275 = vxor.u32 %v273, 2147483648
    %v276 = vxor.u32 %v274, 2147483648
    %v277 = vmul.f32 %v275, 1.442695
    %v278 = vpow.pop %v277
    %v279 = vmul.f32 %v276, 1.442695
    %v280 = vpow.pop %v279
    %v281 = vadd.f32 %v278, 1.0
    %v282 = vadd.f32 %v280, 1.0
    %v283 = vrcp.pop %v281
    %v284 = vmul.f32 1.0, %v283
    %v285 = vrcp.pop %v282
    %v286 = vmul.f32 1.0, %v285
    %v287 = vmul.f32 %v286, 2.0
    %v288 = vsub.f32 %v287, 1.0
    %v289 = vmul.f32 %v284, 0.0
    %v290 = vmul.f32 %v284, %v288
    %292 = vrot.lane.b32.xlu0 %v290, 64
    %v293 = vpop.permute.xlu0 %292
    %v295 = vadd.f32 %v289, %v293
    %v296 = vtanh.pop %v295
    %v297 = vmul.f32 %v286, %v296
    %299 = vrot.lane.b32.xlu0 %v297, 64
    %v300 = vpop.permute.xlu0 %299
    %302 = vst.msk [vmem:[#allocation3] sm:$0xff] %vm228, %v300
    %v303 = vpack.c.bf16 %v297, %v297
    %s304 = smul.u32 1, 2
    %s305 = smul.addr %s304, 8
    %s306 = scalar_lea.vmem [#allocation2], %s305
    %v307 = vld [vmem:[%s306] sm:$0xff]
    %v308 = vld [vmem:[%s306 + $0x8] sm:$0xff]
    %310 = vrot.lane.b32.xlu0 %v303, 64
    %v311 = vpop.permute.xlu0 %310
    %v313 = vsel %vm228, %v311, 0
    %315 = vmatprep.subr.bf16.mxu0 %v213
    %316 = vmatpush1.bf16.msra.mxu0 %v212
    %317 = vmatprep.subr.bf16.mxu0 %v215
    %318 = vmatpush1.bf16.msra.mxu0 %v214
    %319 = vmatprep.subr.bf16.mxu0 %v217
    %320 = vmatpush1.bf16.msra.mxu0 %v216
    %321 = vmatprep.subr.bf16.mxu0 %v219
    %322 = vmatpush1.bf16.msra.mxu0 %v218
    %323 = vmatprep.subr.bf16.mxu0 0
    %324 = vmatpush1.bf16.msra.mxu0 0
    %325 = vmatprep.subr.bf16.mxu0 0
    %326 = vmatpush1.bf16.msra.mxu0 0
    %327 = vmatprep.subr.bf16.mxu0 0
    %328 = vmatpush1.bf16.msra.mxu0 0
    %329 = vmatprep.subr.bf16.mxu0 0
    %330 = vmatpush1.bf16.msra.mxu0 0
    %331 = vmatprep.subr.bf16.mxu0 0
    %332 = vmatpush1.bf16.msra.mxu0 0
    %333 = vmatprep.subr.bf16.mxu0 0
    %334 = vmatpush1.bf16.msra.mxu0 0
    %335 = vmatprep.subr.bf16.mxu0 0
    %336 = vmatpush1.bf16.msra.mxu0 0
    %337 = vmatprep.subr.bf16.mxu0 0
    %338 = vmatpush1.bf16.msra.mxu0 0
    %339 = vmatprep.subr.bf16.mxu0 0
    %340 = vmatpush1.bf16.msra.mxu0 0
    %341 = vmatprep.subr.bf16.mxu0 0
    %342 = vmatpush1.bf16.msra.mxu0 0
    %343 = vmatprep.subr.bf16.mxu0 0
    %344 = vmatpush1.bf16.msra.mxu0 0
    %345 = vmatprep.subr.bf16.mxu0 0
    %346 = vmatpush1.bf16.msra.mxu0 0
    %347 = vmatprep.mubr.bf16.mxu0 0
    %348 = vmatmul.mubr.bf16.gmra.mrb[0].mxu0 %v313
    %v349 = vpop.f32.mrb[0].mxu0
    %v350 = vadd.f32 0.0, %v349
    %v351 = vpop.f32.mrb[0].mxu0
    %v352 = vadd.f32 0.0, %v351
    %v353 = vpop.f32.mrb[0].mxu0
    %v354 = vpop.f32.mrb[0].mxu0
    %355 = vdwg.mxu0
    %v356 = vadd.f32 %v307, %v350
    %v357 = vadd.f32 %v308, %v352
    %v358 = vxor.u32 %v356, 2147483648
    %v359 = vxor.u32 %v357, 2147483648
    %v360 = vmul.f32 %v358, 1.442695
    %v361 = vpow.pop %v360
    %v362 = vmul.f32 %v359, 1.442695
    %v363 = vpow.pop %v362
    %v364 = vadd.f32 %v361, 1.0
    %v365 = vadd.f32 %v363, 1.0
    %v366 = vrcp.pop %v364
    %v367 = vmul.f32 1.0, %v366
    %v368 = vrcp.pop %v365
    %v369 = vmul.f32 1.0, %v368
    %v370 = vmul.f32 %v369, 2.0
    %v371 = vsub.f32 %v370, 1.0
    %v372 = vmul.f32 %v367, %v295
    %v373 = vmul.f32 %v367, %v371
    %375 = vrot.lane.b32.xlu0 %v373, 64
    %v376 = vpop.permute.xlu0 %375
    %v378 = vadd.f32 %v372, %v376
    %v379 = vtanh.pop %v378
    %v380 = vmul.f32 %v369, %v379
    %382 = vrot.lane.b32.xlu0 %v380, 64
    %v383 = vpop.permute.xlu0 %382
    %s385 = scalar_lea.vmem [#allocation3], 8
    %386 = vst.msk [vmem:[%s385] sm:$0xff] %vm228, %v383
    %v387 = vpack.c.bf16 %v380, %v380
    %s388 = smul.u32 2, 2
    %s389 = smul.addr %s388, 8
    %s390 = scalar_lea.vmem [#allocation2], %s389
    %v391 = vld [vmem:[%s390] sm:$0xff]
    %v392 = vld [vmem:[%s390 + $0x8] sm:$0xff]
    %394 = vrot.lane.b32.xlu0 %v387, 64
    %v395 = vpop.permute.xlu0 %394
    %v397 = vsel %vm228, %v395, 0
    %399 = vmatprep.subr.bf16.mxu0 %v213
    %400 = vmatpush1.bf16.msra.mxu0 %v212
    %401 = vmatprep.subr.bf16.mxu0 %v215
    %402 = vmatpush1.bf16.msra.mxu0 %v214
    %403 = vmatprep.subr.bf16.mxu0 %v217
    %404 = vmatpush1.bf16.msra.mxu0 %v216
    %405 = vmatprep.subr.bf16.mxu0 %v219
    %406 = vmatpush1.bf16.msra.mxu0 %v218
    %407 = vmatprep.subr.bf16.mxu0 0
    %408 = vmatpush1.bf16.msra.mxu0 0
    %409 = vmatprep.subr.bf16.mxu0 0
    %410 = vmatpush1.bf16.msra.mxu0 0
    %411 = vmatprep.subr.bf16.mxu0 0
    %412 = vmatpush1.bf16.msra.mxu0 0
    %413 = vmatprep.subr.bf16.mxu0 0
    %414 = vmatpush1.bf16.msra.mxu0 0
    %415 = vmatprep.subr.bf16.mxu0 0
    %416 = vmatpush1.bf16.msra.mxu0 0
    %417 = vmatprep.subr.bf16.mxu0 0
    %418 = vmatpush1.bf16.msra.mxu0 0
    %419 = vmatprep.subr.bf16.mxu0 0
    %420 = vmatpush1.bf16.msra.mxu0 0
    %421 = vmatprep.subr.bf16.mxu0 0
    %422 = vmatpush1.bf16.msra.mxu0 0
    %423 = vmatprep.subr.bf16.mxu0 0
    %424 = vmatpush1.bf16.msra.mxu0 0
    %425 = vmatprep.subr.bf16.mxu0 0
    %426 = vmatpush1.bf16.msra.mxu0 0
    %427 = vmatprep.subr.bf16.mxu0 0
    %428 = vmatpush1.bf16.msra.mxu0 0
    %429 = vmatprep.subr.bf16.mxu0 0
    %430 = vmatpush1.bf16.msra.mxu0 0
    %431 = vmatprep.mubr.bf16.mxu0 0
    %432 = vmatmul.mubr.bf16.gmra.mrb[0].mxu0 %v397
    %v433 = vpop.f32.mrb[0].mxu0
    %v434 = vadd.f32 0.0, %v433
    %v435 = vpop.f32.mrb[0].mxu0
    %v436 = vadd.f32 0.0, %v435
    %v437 = vpop.f32.mrb[0].mxu0
    %v438 = vpop.f32.mrb[0].mxu0
    %439 = vdwg.mxu0
    %v440 = vadd.f32 %v391, %v434
    %v441 = vadd.f32 %v392, %v436
    %v442 = vxor.u32 %v440, 2147483648
    %v443 = vxor.u32 %v441, 2147483648
    %v444 = vmul.f32 %v442, 1.442695
    %v445 = vpow.pop %v444
    %v446 = vmul.f32 %v443, 1.442695
    %v447 = vpow.pop %v446
    %v448 = vadd.f32 %v445, 1.0
    %v449 = vadd.f32 %v447, 1.0
    %v450 = vrcp.pop %v448
    %v451 = vmul.f32 1.0, %v450
    %v452 = vrcp.pop %v449
    %v453 = vmul.f32 1.0, %v452
    %v454 = vmul.f32 %v453, 2.0
    %v455 = vsub.f32 %v454, 1.0
    %v456 = vmul.f32 %v451, %v378
    %v457 = vmul.f32 %v451, %v455
    %459 = vrot.lane.b32.xlu0 %v457, 64
    %v460 = vpop.permute.xlu0 %459
    %v462 = vadd.f32 %v456, %v460
    %v463 = vtanh.pop %v462
    %v464 = vmul.f32 %v453, %v463
    %466 = vrot.lane.b32.xlu0 %v464, 64
    %v467 = vpop.permute.xlu0 %466
    %s469 = scalar_lea.vmem [#allocation3], 16
    %470 = vst.msk [vmem:[%s469] sm:$0xff] %vm228, %v467
    %v471 = vpack.c.bf16 %v464, %v464
    %s472 = smul.u32 3, 2
    %s473 = smul.addr %s472, 8
    %s474 = scalar_lea.vmem [#allocation2], %s473
    %v475 = vld [vmem:[%s474] sm:$0xff]
    %v476 = vld [vmem:[%s474 + $0x8] sm:$0xff]
    %478 = vrot.lane.b32.xlu0 %v471, 64
    %v479 = vpop.permute.xlu0 %478
    %v481 = vsel %vm228, %v479, 0
    %483 = vmatprep.subr.bf16.mxu0 %v213
    %484 = vmatpush1.bf16.msra.mxu0 %v212
    %485 = vmatprep.subr.bf16.mxu0 %v215
    %486 = vmatpush1.bf16.msra.mxu0 %v214
    %487 = vmatprep.subr.bf16.mxu0 %v217
    %488 = vmatpush1.bf16.msra.mxu0 %v216
    %489 = vmatprep.subr.bf16.mxu0 %v219
    %490 = vmatpush1.bf16.msra.mxu0 %v218
    %491 = vmatprep.subr.bf16.mxu0 0
    %492 = vmatpush1.bf16.msra.mxu0 0
    %493 = vmatprep.subr.bf16.mxu0 0
    %494 = vmatpush1.bf16.msra.mxu0 0
    %495 = vmatprep.subr.bf16.mxu0 0
    %496 = vmatpush1.bf16.msra.mxu0 0
    %497 = vmatprep.subr.bf16.mxu0 0
    %498 = vmatpush1.bf16.msra.mxu0 0
    %499 = vmatprep.subr.bf16.mxu0 0
    %500 = vmatpush1.bf16.msra.mxu0 0
    %501 = vmatprep.subr.bf16.mxu0 0
    %502 = vmatpush1.bf16.msra.mxu0 0
    %503 = vmatprep.subr.bf16.mxu0 0
    %504 = vmatpush1.bf16.msra.mxu0 0
    %505 = vmatprep.subr.bf16.mxu0 0
    %506 = vmatpush1.bf16.msra.mxu0 0
    %507 = vmatprep.subr.bf16.mxu0 0
    %508 = vmatpush1.bf16.msra.mxu0 0
    %509 = vmatprep.subr.bf16.mxu0 0
    %510 = vmatpush1.bf16.msra.mxu0 0
    %511 = vmatprep.subr.bf16.mxu0 0
    %512 = vmatpush1.bf16.msra.mxu0 0
    %513 = vmatprep.subr.bf16.mxu0 0
    %514 = vmatpush1.bf16.msra.mxu0 0
    %515 = vmatprep.mubr.bf16.mxu0 0
    %516 = vmatmul.mubr.bf16.gmra.mrb[0].mxu0 %v481
    %v517 = vpop.f32.mrb[0].mxu0
    %v518 = vadd.f32 0.0, %v517
    %v519 = vpop.f32.mrb[0].mxu0
    %v520 = vadd.f32 0.0, %v519
    %v521 = vpop.f32.mrb[0].mxu0
    %v522 = vpop.f32.mrb[0].mxu0
    %523 = vdwg.mxu0
    %v524 = vadd.f32 %v475, %v518
    %v525 = vadd.f32 %v476, %v520
    %v526 = vxor.u32 %v524, 2147483648
    %v527 = vxor.u32 %v525, 2147483648
    %v528 = vmul.f32 %v526, 1.442695
    %v529 = vpow.pop %v528
    %v530 = vmul.f32 %v527, 1.442695
    %v531 = vpow.pop %v530
    %v532 = vadd.f32 %v529, 1.0
    %v533 = vadd.f32 %v531, 1.0
    %v534 = vrcp.pop %v532
    %v535 = vmul.f32 1.0, %v534
    %v536 = vrcp.pop %v533
    %v537 = vmul.f32 1.0, %v536
    %v538 = vmul.f32 %v537, 2.0
    %v539 = vsub.f32 %v538, 1.0
    %v540 = vmul.f32 %v535, %v462
    %v541 = vmul.f32 %v535, %v539
    %543 = vrot.lane.b32.xlu0 %v541, 64
    %v544 = vpop.permute.xlu0 %543
    %v546 = vadd.f32 %v540, %v544
    %v547 = vtanh.pop %v546
    %v548 = vmul.f32 %v537, %v547
    %550 = vrot.lane.b32.xlu0 %v548, 64
    %v551 = vpop.permute.xlu0 %550
    %s553 = scalar_lea.vmem [#allocation3], 24
    %554 = vst.msk [vmem:[%s553] sm:$0xff] %vm228, %v551
    %v555 = vpack.c.bf16 %v548, %v548
    %s556 = smul.u32 4, 2
    %s557 = smul.addr %s556, 8
    %s558 = scalar_lea.vmem [#allocation2], %s557
    %v559 = vld [vmem:[%s558] sm:$0xff]
    %v560 = vld [vmem:[%s558 + $0x8] sm:$0xff]
    %562 = vrot.lane.b32.xlu0 %v555, 64
    %v563 = vpop.permute.xlu0 %562
    %v565 = vsel %vm228, %v563, 0
    %567 = vmatprep.subr.bf16.mxu0 %v213
    %568 = vmatpush1.bf16.msra.mxu0 %v212
    %569 = vmatprep.subr.bf16.mxu0 %v215
    %570 = vmatpush1.bf16.msra.mxu0 %v214
    %571 = vmatprep.subr.bf16.mxu0 %v217
    %572 = vmatpush1.bf16.msra.mxu0 %v216
    %573 = vmatprep.subr.bf16.mxu0 %v219
    %574 = vmatpush1.bf16.msra.mxu0 %v218
    %575 = vmatprep.subr.bf16.mxu0 0
    %576 = vmatpush1.bf16.msra.mxu0 0
    %577 = vmatprep.subr.bf16.mxu0 0
    %578 = vmatpush1.bf16.msra.mxu0 0
    %579 = vmatprep.subr.bf16.mxu0 0
    %580 = vmatpush1.bf16.msra.mxu0 0
    %581 = vmatprep.subr.bf16.mxu0 0
    %582 = vmatpush1.bf16.msra.mxu0 0
    %583 = vmatprep.subr.bf16.mxu0 0
    %584 = vmatpush1.bf16.msra.mxu0 0
    %585 = vmatprep.subr.bf16.mxu0 0
    %586 = vmatpush1.bf16.msra.mxu0 0
    %587 = vmatprep.subr.bf16.mxu0 0
    %588 = vmatpush1.bf16.msra.mxu0 0
    %589 = vmatprep.subr.bf16.mxu0 0
    %590 = vmatpush1.bf16.msra.mxu0 0
    %591 = vmatprep.subr.bf16.mxu0 0
    %592 = vmatpush1.bf16.msra.mxu0 0
    %593 = vmatprep.subr.bf16.mxu0 0
    %594 = vmatpush1.bf16.msra.mxu0 0
    %595 = vmatprep.subr.bf16.mxu0 0
    %596 = vmatpush1.bf16.msra.mxu0 0
    %597 = vmatprep.subr.bf16.mxu0 0
    %598 = vmatpush1.bf16.msra.mxu0 0
    %599 = vmatprep.mubr.bf16.mxu0 0
    %600 = vmatmul.mubr.bf16.gmra.mrb[0].mxu0 %v565
    %v601 = vpop.f32.mrb[0].mxu0
    %v602 = vadd.f32 0.0, %v601
    %v603 = vpop.f32.mrb[0].mxu0
    %v604 = vadd.f32 0.0, %v603
    %v605 = vpop.f32.mrb[0].mxu0
    %v606 = vpop.f32.mrb[0].mxu0
    %607 = vdwg.mxu0
    %v608 = vadd.f32 %v559, %v602
    %v609 = vadd.f32 %v560, %v604
    %v610 = vxor.u32 %v608, 2147483648
    %v611 = vxor.u32 %v609, 2147483648
    %v612 = vmul.f32 %v610, 1.442695
    %v613 = vpow.pop %v612
    %v614 = vmul.f32 %v611, 1.442695
    %v615 = vpow.pop %v614
    %v616 = vadd.f32 %v613, 1.0
    %v617 = vadd.f32 %v615, 1.0
    %v618 = vrcp.pop %v616
    %v619 = vmul.f32 1.0, %v618
    %v620 = vrcp.pop %v617
    %v621 = vmul.f32 1.0, %v620
    %v622 = vmul.f32 %v621, 2.0
    %v623 = vsub.f32 %v622, 1.0
    %v624 = vmul.f32 %v619, %v546
    %v625 = vmul.f32 %v619, %v623
    %627 = vrot.lane.b32.xlu0 %v625, 64
    %v628 = vpop.permute.xlu0 %627
    %v630 = vadd.f32 %v624, %v628
    %v631 = vtanh.pop %v630
    %v632 = vmul.f32 %v621, %v631
    %634 = vrot.lane.b32.xlu0 %v632, 64
    %v635 = vpop.permute.xlu0 %634
    %s637 = scalar_lea.vmem [#allocation3], 32
    %638 = vst.msk [vmem:[%s637] sm:$0xff] %vm228, %v635
    %v639 = vpack.c.bf16 %v632, %v632
    %s640 = smul.u32 5, 2
    %s641 = smul.addr %s640, 8
    %s642 = scalar_lea.vmem [#allocation2], %s641
    %v643 = vld [vmem:[%s642] sm:$0xff]
    %v644 = vld [vmem:[%s642 + $0x8] sm:$0xff]
    %646 = vrot.lane.b32.xlu0 %v639, 64
    %v647 = vpop.permute.xlu0 %646
    %v649 = vsel %vm228, %v647, 0
    %651 = vmatprep.subr.bf16.mxu0 %v213
    %652 = vmatpush1.bf16.msra.mxu0 %v212
    %653 = vmatprep.subr.bf16.mxu0 %v215
    %654 = vmatpush1.bf16.msra.mxu0 %v214
    %655 = vmatprep.subr.bf16.mxu0 %v217
    %656 = vmatpush1.bf16.msra.mxu0 %v216
    %657 = vmatprep.subr.bf16.mxu0 %v219
    %658 = vmatpush1.bf16.msra.mxu0 %v218
    %659 = vmatprep.subr.bf16.mxu0 0
    %660 = vmatpush1.bf16.msra.mxu0 0
    %661 = vmatprep.subr.bf16.mxu0 0
    %662 = vmatpush1.bf16.msra.mxu0 0
    %663 = vmatprep.subr.bf16.mxu0 0
    %664 = vmatpush1.bf16.msra.mxu0 0
    %665 = vmatprep.subr.bf16.mxu0 0
    %666 = vmatpush1.bf16.msra.mxu0 0
    %667 = vmatprep.subr.bf16.mxu0 0
    %668 = vmatpush1.bf16.msra.mxu0 0
    %669 = vmatprep.subr.bf16.mxu0 0
    %670 = vmatpush1.bf16.msra.mxu0 0
    %671 = vmatprep.subr.bf16.mxu0 0
    %672 = vmatpush1.bf16.msra.mxu0 0
    %673 = vmatprep.subr.bf16.mxu0 0
    %674 = vmatpush1.bf16.msra.mxu0 0
    %675 = vmatprep.subr.bf16.mxu0 0
    %676 = vmatpush1.bf16.msra.mxu0 0
    %677 = vmatprep.subr.bf16.mxu0 0
    %678 = vmatpush1.bf16.msra.mxu0 0
    %679 = vmatprep.subr.bf16.mxu0 0
    %680 = vmatpush1.bf16.msra.mxu0 0
    %681 = vmatprep.subr.bf16.mxu0 0
    %682 = vmatpush1.bf16.msra.mxu0 0
    %683 = vmatprep.mubr.bf16.mxu0 0
    %684 = vmatmul.mubr.bf16.gmra.mrb[0].mxu0 %v649
    %v685 = vpop.f32.mrb[0].mxu0
    %v686 = vadd.f32 0.0, %v685
    %v687 = vpop.f32.mrb[0].mxu0
    %v688 = vadd.f32 0.0, %v687
    %v689 = vpop.f32.mrb[0].mxu0
    %v690 = vpop.f32.mrb[0].mxu0
    %691 = vdwg.mxu0
    %v692 = vadd.f32 %v643, %v686
    %v693 = vadd.f32 %v644, %v688
    %v694 = vxor.u32 %v692, 2147483648
    %v695 = vxor.u32 %v693, 2147483648
    %v696 = vmul.f32 %v694, 1.442695
    %v697 = vpow.pop %v696
    %v698 = vmul.f32 %v695, 1.442695
    %v699 = vpow.pop %v698
    %v700 = vadd.f32 %v697, 1.0
    %v701 = vadd.f32 %v699, 1.0
    %v702 = vrcp.pop %v700
    %v703 = vmul.f32 1.0, %v702
    %v704 = vrcp.pop %v701
    %v705 = vmul.f32 1.0, %v704
    %v706 = vmul.f32 %v705, 2.0
    %v707 = vsub.f32 %v706, 1.0
    %v708 = vmul.f32 %v703, %v630
    %v709 = vmul.f32 %v703, %v707
    %711 = vrot.lane.b32.xlu0 %v709, 64
    %v712 = vpop.permute.xlu0 %711
    %v714 = vadd.f32 %v708, %v712
    %v715 = vtanh.pop %v714
    %v716 = vmul.f32 %v705, %v715
    %718 = vrot.lane.b32.xlu0 %v716, 64
    %v719 = vpop.permute.xlu0 %718
    %s721 = scalar_lea.vmem [#allocation3], 40
    %722 = vst.msk [vmem:[%s721] sm:$0xff] %vm228, %v719
    %v723 = vpack.c.bf16 %v716, %v716
    %s724 = smul.u32 6, 2
    %s725 = smul.addr %s724, 8
    %s726 = scalar_lea.vmem [#allocation2], %s725
    %v727 = vld [vmem:[%s726] sm:$0xff]
    %v728 = vld [vmem:[%s726 + $0x8] sm:$0xff]
    %730 = vrot.lane.b32.xlu0 %v723, 64
    %v731 = vpop.permute.xlu0 %730
    %v733 = vsel %vm228, %v731, 0
    %735 = vmatprep.subr.bf16.mxu0 %v213
    %736 = vmatpush1.bf16.msra.mxu0 %v212
    %737 = vmatprep.subr.bf16.mxu0 %v215
    %738 = vmatpush1.bf16.msra.mxu0 %v214
    %739 = vmatprep.subr.bf16.mxu0 %v217
    %740 = vmatpush1.bf16.msra.mxu0 %v216
    %741 = vmatprep.subr.bf16.mxu0 %v219
    %742 = vmatpush1.bf16.msra.mxu0 %v218
    %743 = vmatprep.subr.bf16.mxu0 0
    %744 = vmatpush1.bf16.msra.mxu0 0
    %745 = vmatprep.subr.bf16.mxu0 0
    %746 = vmatpush1.bf16.msra.mxu0 0
    %747 = vmatprep.subr.bf16.mxu0 0
    %748 = vmatpush1.bf16.msra.mxu0 0
    %749 = vmatprep.subr.bf16.mxu0 0
    %750 = vmatpush1.bf16.msra.mxu0 0
    %751 = vmatprep.subr.bf16.mxu0 0
    %752 = vmatpush1.bf16.msra.mxu0 0
    %753 = vmatprep.subr.bf16.mxu0 0
    %754 = vmatpush1.bf16.msra.mxu0 0
    %755 = vmatprep.subr.bf16.mxu0 0
    %756 = vmatpush1.bf16.msra.mxu0 0
    %757 = vmatprep.subr.bf16.mxu0 0
    %758 = vmatpush1.bf16.msra.mxu0 0
    %759 = vmatprep.subr.bf16.mxu0 0
    %760 = vmatpush1.bf16.msra.mxu0 0
    %761 = vmatprep.subr.bf16.mxu0 0
    %762 = vmatpush1.bf16.msra.mxu0 0
    %763 = vmatprep.subr.bf16.mxu0 0
    %764 = vmatpush1.bf16.msra.mxu0 0
    %765 = vmatprep.subr.bf16.mxu0 0
    %766 = vmatpush1.bf16.msra.mxu0 0
    %767 = vmatprep.mubr.bf16.mxu0 0
    %768 = vmatmul.mubr.bf16.gmra.mrb[0].mxu0 %v733
    %v769 = vpop.f32.mrb[0].mxu0
    %v770 = vadd.f32 0.0, %v769
    %v771 = vpop.f32.mrb[0].mxu0
    %v772 = vadd.f32 0.0, %v771
    %v773 = vpop.f32.mrb[0].mxu0
    %v774 = vpop.f32.mrb[0].mxu0
    %775 = vdwg.mxu0
    %v776 = vadd.f32 %v727, %v770
    %v777 = vadd.f32 %v728, %v772
    %v778 = vxor.u32 %v776, 2147483648
    %v779 = vxor.u32 %v777, 2147483648
    %v780 = vmul.f32 %v778, 1.442695
    %v781 = vpow.pop %v780
    %v782 = vmul.f32 %v779, 1.442695
    %v783 = vpow.pop %v782
    %v784 = vadd.f32 %v781, 1.0
    %v785 = vadd.f32 %v783, 1.0
    %v786 = vrcp.pop %v784
    %v787 = vmul.f32 1.0, %v786
    %v788 = vrcp.pop %v785
    %v789 = vmul.f32 1.0, %v788
    %v790 = vmul.f32 %v789, 2.0
    %v791 = vsub.f32 %v790, 1.0
    %v792 = vmul.f32 %v787, %v714
    %v793 = vmul.f32 %v787, %v791
    %795 = vrot.lane.b32.xlu0 %v793, 64
    %v796 = vpop.permute.xlu0 %795
    %v798 = vadd.f32 %v792, %v796
    %v799 = vtanh.pop %v798
    %v800 = vmul.f32 %v789, %v799
    %802 = vrot.lane.b32.xlu0 %v800, 64
    %v803 = vpop.permute.xlu0 %802
    %s805 = scalar_lea.vmem [#allocation3], 48
    %806 = vst.msk [vmem:[%s805] sm:$0xff] %vm228, %v803
    %v807 = vpack.c.bf16 %v800, %v800
    %s808 = smul.u32 7, 2
    %s809 = smul.addr %s808, 8
    %s810 = scalar_lea.vmem [#allocation2], %s809
    %v811 = vld [vmem:[%s810] sm:$0xff]
    %v812 = vld [vmem:[%s810 + $0x8] sm:$0xff]
    %814 = vrot.lane.b32.xlu0 %v807, 64
    %v815 = vpop.permute.xlu0 %814
    %v817 = vsel %vm228, %v815, 0
    %819 = vmatprep.subr.bf16.mxu0 %v213
    %820 = vmatpush1.bf16.msra.mxu0 %v212
    %821 = vmatprep.subr.bf16.mxu0 %v215
    %822 = vmatpush1.bf16.msra.mxu0 %v214
    %823 = vmatprep.subr.bf16.mxu0 %v217
    %824 = vmatpush1.bf16.msra.mxu0 %v216
    %825 = vmatprep.subr.bf16.mxu0 %v219
    %826 = vmatpush1.bf16.msra.mxu0 %v218
    %827 = vmatprep.subr.bf16.mxu0 0
    %828 = vmatpush1.bf16.msra.mxu0 0
    %829 = vmatprep.subr.bf16.mxu0 0
    %830 = vmatpush1.bf16.msra.mxu0 0
    %831 = vmatprep.subr.bf16.mxu0 0
    %832 = vmatpush1.bf16.msra.mxu0 0
    %833 = vmatprep.subr.bf16.mxu0 0
    %834 = vmatpush1.bf16.msra.mxu0 0
    %835 = vmatprep.subr.bf16.mxu0 0
    %836 = vmatpush1.bf16.msra.mxu0 0
    %837 = vmatprep.subr.bf16.mxu0 0
    %838 = vmatpush1.bf16.msra.mxu0 0
    %839 = vmatprep.subr.bf16.mxu0 0
    %840 = vmatpush1.bf16.msra.mxu0 0
    %841 = vmatprep.subr.bf16.mxu0 0
    %842 = vmatpush1.bf16.msra.mxu0 0
    %843 = vmatprep.subr.bf16.mxu0 0
    %844 = vmatpush1.bf16.msra.mxu0 0
    %845 = vmatprep.subr.bf16.mxu0 0
    %846 = vmatpush1.bf16.msra.mxu0 0
    %847 = vmatprep.subr.bf16.mxu0 0
    %848 = vmatpush1.bf16.msra.mxu0 0
    %849 = vmatprep.subr.bf16.mxu0 0
    %850 = vmatpush1.bf16.msra.mxu0 0
    %851 = vmatprep.mubr.bf16.mxu0 0
    %852 = vmatmul.mubr.bf16.gmra.mrb[0].mxu0 %v817
    %v853 = vpop.f32.mrb[0].mxu0
    %v854 = vadd.f32 0.0, %v853
    %v855 = vpop.f32.mrb[0].mxu0
    %v856 = vadd.f32 0.0, %v855
    %v857 = vpop.f32.mrb[0].mxu0
    %v858 = vpop.f32.mrb[0].mxu0
    %859 = vdwg.mxu0
    %v860 = vadd.f32 %v811, %v854
    %v861 = vadd.f32 %v812, %v856
    %v862 = vxor.u32 %v860, 2147483648
    %v863 = vxor.u32 %v861, 2147483648
    %v864 = vmul.f32 %v862, 1.442695
    %v865 = vpow.pop %v864
    %v866 = vmul.f32 %v863, 1.442695
    %v867 = vpow.pop %v866
    %v868 = vadd.f32 %v865, 1.0
    %v869 = vadd.f32 %v867, 1.0
    %v870 = vrcp.pop %v868
    %v871 = vmul.f32 1.0, %v870
    %v872 = vrcp.pop %v869
    %v873 = vmul.f32 1.0, %v872
    %v874 = vmul.f32 %v873, 2.0
    %v875 = vsub.f32 %v874, 1.0
    %v876 = vmul.f32 %v871, %v798
    %v877 = vmul.f32 %v871, %v875
    %879 = vrot.lane.b32.xlu0 %v877, 64
    %v880 = vpop.permute.xlu0 %879
    %v882 = vadd.f32 %v876, %v880
    %v883 = vtanh.pop %v882
    %v884 = vmul.f32 %v873, %v883
    %886 = vrot.lane.b32.xlu0 %v884, 64
    %v887 = vpop.permute.xlu0 %886
    %s889 = scalar_lea.vmem [#allocation3], 56
    %890 = vst.msk [vmem:[%s889] sm:$0xff] %vm228, %v887
    loop: start=0, step=1, limit=8
    $region61: #{tpu_custom_call.1} parent=1 // loop_pre_header
      _
    $region62: #{tpu_custom_call.1} parent=1 // loop_header
      %s892 = sphi 0, %s896
      %p893 = scmp.ge.s32.totalorder %s892, 8
    $region63: #{tpu_custom_call.1} parent=1 // loop_header_branch
      %895 = sbr.rel (%p893) target = $region67
    $region64: #{tpu_custom_call.1} parent=1 // loop_body
      %s897 = smul.u32 %s892, 8
      %s898 = scalar_lea.vmem [#allocation3], %s897
      %v899 = vld [vmem:[%s898] sm:$0xff]
      %v900 = vpack.c.bf16 %v899, %v899
      %v901 = vld [vmem:[%s3] sm:$0xff]
      %v902 = vld [vmem:[%s3 + $0x8] sm:$0xff]
      %v903 = vld [vmem:[%s3 + $0x10] sm:$0xff]
      %v904 = vld [vmem:[%s3 + $0x18] sm:$0xff]
      %v905 = vld [vmem:[%s3 + $0x20] sm:$0xff]
      %v906 = vld [vmem:[%s3 + $0x28] sm:$0xff]
      %v907 = vld [vmem:[%s3 + $0x30] sm:$0xff]
      %v908 = vld [vmem:[%s3 + $0x38] sm:$0xff]
      %v909 = vld [vmem:[%s4] sm:$0x3]
      %v911 = vlaneseq
      %v912 = vshrl.u32 %v911, 7
      %v913 = vsub.s32 0, %v912
      %v914 = vrot.slane %v909, %v913
      %v915 = vlaneseq
      %v916 = vshrl.u32 %v915, 7
      %v917 = vsub.s32 1, %v916
      %v918 = vrot.slane %v909, %v917
      %v929 = vunpack.c.l.b16 %v901
      %v930 = vunpack.c.h.b16 %v901
      %v931 = vunpack.c.l.b16 %v902
      %v932 = vunpack.c.h.b16 %v902
      %v933 = vunpack.c.l.b16 %v903
      %v934 = vunpack.c.h.b16 %v903
      %v935 = vunpack.c.l.b16 %v904
      %v936 = vunpack.c.h.b16 %v904
      %v937 = vunpack.c.l.b16 %v905
      %v938 = vunpack.c.h.b16 %v905
      %v939 = vunpack.c.l.b16 %v906
      %v940 = vunpack.c.h.b16 %v906
      %v941 = vunpack.c.l.b16 %v907
      %v942 = vunpack.c.h.b16 %v907
      %v943 = vunpack.c.l.b16 %v908
      %v944 = vunpack.c.h.b16 %v908
      %v945 = vpack.c.b16 %v931, %v929
      %v946 = vpack.c.b16 %v932, %v930
      %v947 = vpack.c.b16 %v935, %v933
      %v948 = vpack.c.b16 %v936, %v934
      %v949 = vpack.c.b16 %v939, %v937
      %v950 = vpack.c.b16 %v940, %v938
      %v951 = vpack.c.b16 %v943, %v941
      %v952 = vpack.c.b16 %v944, %v942
      %v962 = vsel %vm228, %v900, 0
      %964 = vmatprep.subr.bf16.mxu0 %v946
      %965 = vmatpush1.bf16.msra.mxu0 %v945
      %966 = vmatprep.subr.bf16.mxu0 %v948
      %967 = vmatpush1.bf16.msra.mxu0 %v947
      %968 = vmatprep.subr.bf16.mxu0 %v950
      %969 = vmatpush1.bf16.msra.mxu0 %v949
      %970 = vmatprep.subr.bf16.mxu0 %v952
      %971 = vmatpush1.bf16.msra.mxu0 %v951
      %972 = vmatprep.subr.bf16.mxu0 0
      %973 = vmatpush1.bf16.msra.mxu0 0
      %974 = vmatprep.subr.bf16.mxu0 0
      %975 = vmatpush1.bf16.msra.mxu0 0
      %976 = vmatprep.subr.bf16.mxu0 0
      %977 = vmatpush1.bf16.msra.mxu0 0
      %978 = vmatprep.subr.bf16.mxu0 0
      %979 = vmatpush1.bf16.msra.mxu0 0
      %980 = vmatprep.subr.bf16.mxu0 0
      %981 = vmatpush1.bf16.msra.mxu0 0
      %982 = vmatprep.subr.bf16.mxu0 0
      %983 = vmatpush1.bf16.msra.mxu0 0
      %984 = vmatprep.subr.bf16.mxu0 0
      %985 = vmatpush1.bf16.msra.mxu0 0
      %986 = vmatprep.subr.bf16.mxu0 0
      %987 = vmatpush1.bf16.msra.mxu0 0
      %988 = vmatprep.subr.bf16.mxu0 0
      %989 = vmatpush1.bf16.msra.mxu0 0
      %990 = vmatprep.subr.bf16.mxu0 0
      %991 = vmatpush1.bf16.msra.mxu0 0
      %992 = vmatprep.subr.bf16.mxu0 0
      %993 = vmatpush1.bf16.msra.mxu0 0
      %994 = vmatprep.subr.bf16.mxu0 0
      %995 = vmatpush1.bf16.msra.mxu0 0
      %996 = vmatprep.mubr.bf16.mxu0 0
      %997 = vmatmul.mubr.bf16.gmra.mrb[0].mxu0 %v962
      %v998 = vpop.f32.mrb[0].mxu0
      %v999 = vadd.f32 %v914, %v998
      %v1000 = vpop.f32.mrb[0].mxu0
      %v1001 = vadd.f32 %v918, %v1000
      %v1002 = vpop.f32.mrb[0].mxu0
      %v1003 = vpop.f32.mrb[0].mxu0
      %1004 = vdwg.mxu0
      %s1005 = sshra.s32 %s897, 3
      %s1006 = sand.u32 %s897, 7
      %s1007 = smul.u32 %s1005, 2
      %s1008 = smul.addr %s1007, 8
      %s1009 = scalar_lea.vmem [#allocation2], %s1008
      %1010 = vst [vmem:[%s1009] sm:$0xff] %v999
      %1011 = vst [vmem:[%s1009 + $0x8] sm:$0xff] %v1001
    $region65: #{tpu_custom_call.1} parent=1 // loop_footer
      %s896 = sadd.s32 1, %s892
    $region66: #{tpu_custom_call.1} parent=1 // loop_footer_branch
      %891 = sbr.rel target = $region62
    $region67: #{tpu_custom_call.1} parent=1 // loop_exit
      _
    %v1012 = vld [vmem:[#allocation9] sm:$0xff]
    %v1013 = vld [vmem:[#allocation9 + $0x8] sm:$0xff]
    %v1014 = vld [vmem:[#allocation9 + $0x10] sm:$0xff]
    %v1015 = vld [vmem:[#allocation9 + $0x18] sm:$0xff]
    %v1016 = vld [vmem:[#allocation9 + $0x20] sm:$0xff]
    %v1017 = vld [vmem:[#allocation9 + $0x28] sm:$0xff]
    %v1018 = vld [vmem:[#allocation9 + $0x30] sm:$0xff]
    %v1019 = vld [vmem:[#allocation9 + $0x38] sm:$0xff]
    %v1020 = vld [vmem:[%s185] sm:$0xff]
    %v1021 = vld [vmem:[%s185 + $0x8] sm:$0xff]
    %v1030 = vunpack.c.l.b16 %v1012
    %v1031 = vunpack.c.h.b16 %v1012
    %v1032 = vunpack.c.l.b16 %v1013
    %v1033 = vunpack.c.h.b16 %v1013
    %v1034 = vunpack.c.l.b16 %v1014
    %v1035 = vunpack.c.h.b16 %v1014
    %v1036 = vunpack.c.l.b16 %v1015
    %v1037 = vunpack.c.h.b16 %v1015
    %v1038 = vunpack.c.l.b16 %v1016
    %v1039 = vunpack.c.h.b16 %v1016
    %v1040 = vunpack.c.l.b16 %v1017
    %v1041 = vunpack.c.h.b16 %v1017
    %v1042 = vunpack.c.l.b16 %v1018
    %v1043 = vunpack.c.h.b16 %v1018
    %v1044 = vunpack.c.l.b16 %v1019
    %v1045 = vunpack.c.h.b16 %v1019
    %v1046 = vpack.c.b16 %v1032, %v1030
    %v1047 = vpack.c.b16 %v1033, %v1031
    %v1048 = vpack.c.b16 %v1036, %v1034
    %v1049 = vpack.c.b16 %v1037, %v1035
    %v1050 = vpack.c.b16 %v1040, %v1038
    %v1051 = vpack.c.b16 %v1041, %v1039
    %v1052 = vpack.c.b16 %v1044, %v1042
    %v1053 = vpack.c.b16 %v1045, %v1043
    %1062 = vmatprep.subr.bf16.mxu0 %v1047
    %1063 = vmatpush1.bf16.msra.mxu0 %v1046
    %1064 = vmatprep.subr.bf16.mxu0 %v1049
    %1065 = vmatpush1.bf16.msra.mxu0 %v1048
    %1066 = vmatprep.subr.bf16.mxu0 %v1051
    %1067 = vmatpush1.bf16.msra.mxu0 %v1050
    %1068 = vmatprep.subr.bf16.mxu0 %v1053
    %1069 = vmatpush1.bf16.msra.mxu0 %v1052
    %1070 = vmatprep.subr.bf16.mxu0 0
    %1071 = vmatpush1.bf16.msra.mxu0 0
    %1072 = vmatprep.subr.bf16.mxu0 0
    %1073 = vmatpush1.bf16.msra.mxu0 0
    %1074 = vmatprep.subr.bf16.mxu0 0
    %1075 = vmatpush1.bf16.msra.mxu0 0
    %1076 = vmatprep.subr.bf16.mxu0 0
    %1077 = vmatpush1.bf16.msra.mxu0 0
    %1078 = vmatprep.subr.bf16.mxu0 0
    %1079 = vmatpush1.bf16.msra.mxu0 0
    %1080 = vmatprep.subr.bf16.mxu0 0
    %1081 = vmatpush1.bf16.msra.mxu0 0
    %1082 = vmatprep.subr.bf16.mxu0 0
    %1083 = vmatpush1.bf16.msra.mxu0 0
    %1084 = vmatprep.subr.bf16.mxu0 0
    %1085 = vmatpush1.bf16.msra.mxu0 0
    %1086 = vmatprep.subr.bf16.mxu0 0
    %1087 = vmatpush1.bf16.msra.mxu0 0
    %1088 = vmatprep.subr.bf16.mxu0 0
    %1089 = vmatpush1.bf16.msra.mxu0 0
    %1090 = vmatprep.subr.bf16.mxu0 0
    %1091 = vmatpush1.bf16.msra.mxu0 0
    %1092 = vmatprep.subr.bf16.mxu0 0
    %1093 = vmatpush1.bf16.msra.mxu0 0
    %1094 = vmatprep.mubr.bf16.mxu0 0
    %1095 = vmatmul.mubr.bf16.gmra.mrb[0].mxu0 %v230
    %v1096 = vpop.f32.mrb[0].mxu0
    %v1097 = vadd.f32 0.0, %v1096
    %v1098 = vpop.f32.mrb[0].mxu0
    %v1099 = vadd.f32 0.0, %v1098
    %v1100 = vpop.f32.mrb[0].mxu0
    %v1101 = vpop.f32.mrb[0].mxu0
    %1102 = vdwg.mxu0
    %v1103 = vadd.f32 %v1020, %v1097
    %v1104 = vadd.f32 %v1021, %v1099
    %v1105 = vxor.u32 %v1103, 2147483648
    %v1106 = vxor.u32 %v1104, 2147483648
    %v1107 = vmul.f32 %v1105, 1.442695
    %v1108 = vpow.pop %v1107
    %v1109 = vmul.f32 %v1106, 1.442695
    %v1110 = vpow.pop %v1109
    %v1111 = vadd.f32 %v1108, 1.0
    %v1112 = vadd.f32 %v1110, 1.0
    %v1113 = vrcp.pop %v1111
    %v1114 = vmul.f32 1.0, %v1113
    %v1115 = vrcp.pop %v1112
    %v1116 = vmul.f32 1.0, %v1115
    %v1117 = vmul.f32 %v1116, 2.0
    %v1118 = vsub.f32 %v1117, 1.0
    %v1119 = vmul.f32 %v1114, 0.0
    %v1120 = vmul.f32 %v1114, %v1118
    %1122 = vrot.lane.b32.xlu0 %v1120, 64
    %v1123 = vpop.permute.xlu0 %1122
    %v1125 = vadd.f32 %v1119, %v1123
    %v1126 = vtanh.pop %v1125
    %v1127 = vmul.f32 %v1116, %v1126
    %1129 = vrot.lane.b32.xlu0 %v1127, 64
    %v1130 = vpop.permute.xlu0 %1129
    %1132 = vst.msk [vmem:[#allocation3] sm:$0xff] %vm228, %v1130
    %v1133 = vpack.c.bf16 %v1127, %v1127
    %v1134 = vld [vmem:[%s306] sm:$0xff]
    %v1135 = vld [vmem:[%s306 + $0x8] sm:$0xff]
    %1137 = vrot.lane.b32.xlu0 %v1133, 64
    %v1138 = vpop.permute.xlu0 %1137
    %v1140 = vsel %vm228, %v1138, 0
    %1142 = vmatprep.subr.bf16.mxu0 %v1047
    %1143 = vmatpush1.bf16.msra.mxu0 %v1046
    %1144 = vmatprep.subr.bf16.mxu0 %v1049
    %1145 = vmatpush1.bf16.msra.mxu0 %v1048
    %1146 = vmatprep.subr.bf16.mxu0 %v1051
    %1147 = vmatpush1.bf16.msra.mxu0 %v1050
    %1148 = vmatprep.subr.bf16.mxu0 %v1053
    %1149 = vmatpush1.bf16.msra.mxu0 %v1052
    %1150 = vmatprep.subr.bf16.mxu0 0
    %1151 = vmatpush1.bf16.msra.mxu0 0
    %1152 = vmatprep.subr.bf16.mxu0 0
    %1153 = vmatpush1.bf16.msra.mxu0 0
    %1154 = vmatprep.subr.bf16.mxu0 0
    %1155 = vmatpush1.bf16.msra.mxu0 0
    %1156 = vmatprep.subr.bf16.mxu0 0
    %1157 = vmatpush1.bf16.msra.mxu0 0
    %1158 = vmatprep.subr.bf16.mxu0 0
    %1159 = vmatpush1.bf16.msra.mxu0 0
    %1160 = vmatprep.subr.bf16.mxu0 0
    %1161 = vmatpush1.bf16.msra.mxu0 0
    %1162 = vmatprep.subr.bf16.mxu0 0
    %1163 = vmatpush1.bf16.msra.mxu0 0
    %1164 = vmatprep.subr.bf16.mxu0 0
    %1165 = vmatpush1.bf16.msra.mxu0 0
    %1166 = vmatprep.subr.bf16.mxu0 0
    %1167 = vmatpush1.bf16.msra.mxu0 0
    %1168 = vmatprep.subr.bf16.mxu0 0
    %1169 = vmatpush1.bf16.msra.mxu0 0
    %1170 = vmatprep.subr.bf16.mxu0 0
    %1171 = vmatpush1.bf16.msra.mxu0 0
    %1172 = vmatprep.subr.bf16.mxu0 0
    %1173 = vmatpush1.bf16.msra.mxu0 0
    %1174 = vmatprep.mubr.bf16.mxu0 0
    %1175 = vmatmul.mubr.bf16.gmra.mrb[0].mxu0 %v1140
    %v1176 = vpop.f32.mrb[0].mxu0
    %v1177 = vadd.f32 0.0, %v1176
    %v1178 = vpop.f32.mrb[0].mxu0
    %v1179 = vadd.f32 0.0, %v1178
    %v1180 = vpop.f32.mrb[0].mxu0
    %v1181 = vpop.f32.mrb[0].mxu0
    %1182 = vdwg.mxu0
    %v1183 = vadd.f32 %v1134, %v1177
    %v1184 = vadd.f32 %v1135, %v1179
    %v1185 = vxor.u32 %v1183, 2147483648
    %v1186 = vxor.u32 %v1184, 2147483648
    %v1187 = vmul.f32 %v1185, 1.442695
    %v1188 = vpow.pop %v1187
    %v1189 = vmul.f32 %v1186, 1.442695
    %v1190 = vpow.pop %v1189
    %v1191 = vadd.f32 %v1188, 1.0
    %v1192 = vadd.f32 %v1190, 1.0
    %v1193 = vrcp.pop %v1191
    %v1194 = vmul.f32 1.0, %v1193
    %v1195 = vrcp.pop %v1192
    %v1196 = vmul.f32 1.0, %v1195
    %v1197 = vmul.f32 %v1196, 2.0
    %v1198 = vsub.f32 %v1197, 1.0
    %v1199 = vmul.f32 %v1194, %v1125
    %v1200 = vmul.f32 %v1194, %v1198
    %1202 = vrot.lane.b32.xlu0 %v1200, 64
    %v1203 = vpop.permute.xlu0 %1202
    %v1205 = vadd.f32 %v1199, %v1203
    %v1206 = vtanh.pop %v1205
    %v1207 = vmul.f32 %v1196, %v1206
    %1209 = vrot.lane.b32.xlu0 %v1207, 64
    %v1210 = vpop.permute.xlu0 %1209
    %1212 = vst.msk [vmem:[%s385] sm:$0xff] %vm228, %v1210
    %v1213 = vpack.c.bf16 %v1207, %v1207
    %v1214 = vld [vmem:[%s390] sm:$0xff]
    %v1215 = vld [vmem:[%s390 + $0x8] sm:$0xff]
    %1217 = vrot.lane.b32.xlu0 %v1213, 64
    %v1218 = vpop.permute.xlu0 %1217
    %v1220 = vsel %vm228, %v1218, 0
    %1222 = vmatprep.subr.bf16.mxu0 %v1047
    %1223 = vmatpush1.bf16.msra.mxu0 %v1046
    %1224 = vmatprep.subr.bf16.mxu0 %v1049
    %1225 = vmatpush1.bf16.msra.mxu0 %v1048
    %1226 = vmatprep.subr.bf16.mxu0 %v1051
    %1227 = vmatpush1.bf16.msra.mxu0 %v1050
    %1228 = vmatprep.subr.bf16.mxu0 %v1053
    %1229 = vmatpush1.bf16.msra.mxu0 %v1052
    %1230 = vmatprep.subr.bf16.mxu0 0
    %1231 = vmatpush1.bf16.msra.mxu0 0
    %1232 = vmatprep.subr.bf16.mxu0 0
    %1233 = vmatpush1.bf16.msra.mxu0 0
    %1234 = vmatprep.subr.bf16.mxu0 0
    %1235 = vmatpush1.bf16.msra.mxu0 0
    %1236 = vmatprep.subr.bf16.mxu0 0
    %1237 = vmatpush1.bf16.msra.mxu0 0
    %1238 = vmatprep.subr.bf16.mxu0 0
    %1239 = vmatpush1.bf16.msra.mxu0 0
    %1240 = vmatprep.subr.bf16.mxu0 0
    %1241 = vmatpush1.bf16.msra.mxu0 0
    %1242 = vmatprep.subr.bf16.mxu0 0
    %1243 = vmatpush1.bf16.msra.mxu0 0
    %1244 = vmatprep.subr.bf16.mxu0 0
    %1245 = vmatpush1.bf16.msra.mxu0 0
    %1246 = vmatprep.subr.bf16.mxu0 0
    %1247 = vmatpush1.bf16.msra.mxu0 0
    %1248 = vmatprep.subr.bf16.mxu0 0
    %1249 = vmatpush1.bf16.msra.mxu0 0
    %1250 = vmatprep.subr.bf16.mxu0 0
    %1251 = vmatpush1.bf16.msra.mxu0 0
    %1252 = vmatprep.subr.bf16.mxu0 0
    %1253 = vmatpush1.bf16.msra.mxu0 0
    %1254 = vmatprep.mubr.bf16.mxu0 0
    %1255 = vmatmul.mubr.bf16.gmra.mrb[0].mxu0 %v1220
    %v1256 = vpop.f32.mrb[0].mxu0
    %v1257 = vadd.f32 0.0, %v1256
    %v1258 = vpop.f32.mrb[0].mxu0
    %v1259 = vadd.f32 0.0, %v1258
    %v1260 = vpop.f32.mrb[0].mxu0
    %v1261 = vpop.f32.mrb[0].mxu0
    %1262 = vdwg.mxu0
    %v1263 = vadd.f32 %v1214, %v1257
    %v1264 = vadd.f32 %v1215, %v1259
    %v1265 = vxor.u32 %v1263, 2147483648
    %v1266 = vxor.u32 %v1264, 2147483648
    %v1267 = vmul.f32 %v1265, 1.442695
    %v1268 = vpow.pop %v1267
    %v1269 = vmul.f32 %v1266, 1.442695
    %v1270 = vpow.pop %v1269
    %v1271 = vadd.f32 %v1268, 1.0
    %v1272 = vadd.f32 %v1270, 1.0
    %v1273 = vrcp.pop %v1271
    %v1274 = vmul.f32 1.0, %v1273
    %v1275 = vrcp.pop %v1272
    %v1276 = vmul.f32 1.0, %v1275
    %v1277 = vmul.f32 %v1276, 2.0
    %v1278 = vsub.f32 %v1277, 1.0
    %v1279 = vmul.f32 %v1274, %v1205
    %v1280 = vmul.f32 %v1274, %v1278
    %1282 = vrot.lane.b32.xlu0 %v1280, 64
    %v1283 = vpop.permute.xlu0 %1282
    %v1285 = vadd.f32 %v1279, %v1283
    %v1286 = vtanh.pop %v1285
    %v1287 = vmul.f32 %v1276, %v1286
    %1289 = vrot.lane.b32.xlu0 %v1287, 64
    %v1290 = vpop.permute.xlu0 %1289
    %1292 = vst.msk [vmem:[%s469] sm:$0xff] %vm228, %v1290
    %v1293 = vpack.c.bf16 %v1287, %v1287
    %v1294 = vld [vmem:[%s474] sm:$0xff]
    %v1295 = vld [vmem:[%s474 + $0x8] sm:$0xff]
    %1297 = vrot.lane.b32.xlu0 %v1293, 64
    %v1298 = vpop.permute.xlu0 %1297
    %v1300 = vsel %vm228, %v1298, 0
    %1302 = vmatprep.subr.bf16.mxu0 %v1047
    %1303 = vmatpush1.bf16.msra.mxu0 %v1046
    %1304 = vmatprep.subr.bf16.mxu0 %v1049
    %1305 = vmatpush1.bf16.msra.mxu0 %v1048
    %1306 = vmatprep.subr.bf16.mxu0 %v1051
    %1307 = vmatpush1.bf16.msra.mxu0 %v1050
    %1308 = vmatprep.subr.bf16.mxu0 %v1053
    %1309 = vmatpush1.bf16.msra.mxu0 %v1052
    %1310 = vmatprep.subr.bf16.mxu0 0
    %1311 = vmatpush1.bf16.msra.mxu0 0
    %1312 = vmatprep.subr.bf16.mxu0 0
    %1313 = vmatpush1.bf16.msra.mxu0 0
    %1314 = vmatprep.subr.bf16.mxu0 0
    %1315 = vmatpush1.bf16.msra.mxu0 0
    %1316 = vmatprep.subr.bf16.mxu0 0
    %1317 = vmatpush1.bf16.msra.mxu0 0
    %1318 = vmatprep.subr.bf16.mxu0 0
    %1319 = vmatpush1.bf16.msra.mxu0 0
    %1320 = vmatprep.subr.bf16.mxu0 0
    %1321 = vmatpush1.bf16.msra.mxu0 0
    %1322 = vmatprep.subr.bf16.mxu0 0
    %1323 = vmatpush1.bf16.msra.mxu0 0
    %1324 = vmatprep.subr.bf16.mxu0 0
    %1325 = vmatpush1.bf16.msra.mxu0 0
    %1326 = vmatprep.subr.bf16.mxu0 0
    %1327 = vmatpush1.bf16.msra.mxu0 0
    %1328 = vmatprep.subr.bf16.mxu0 0
    %1329 = vmatpush1.bf16.msra.mxu0 0
    %1330 = vmatprep.subr.bf16.mxu0 0
    %1331 = vmatpush1.bf16.msra.mxu0 0
    %1332 = vmatprep.subr.bf16.mxu0 0
    %1333 = vmatpush1.bf16.msra.mxu0 0
    %1334 = vmatprep.mubr.bf16.mxu0 0
    %1335 = vmatmul.mubr.bf16.gmra.mrb[0].mxu0 %v1300
    %v1336 = vpop.f32.mrb[0].mxu0
    %v1337 = vadd.f32 0.0, %v1336
    %v1338 = vpop.f32.mrb[0].mxu0
    %v1339 = vadd.f32 0.0, %v1338
    %v1340 = vpop.f32.mrb[0].mxu0
    %v1341 = vpop.f32.mrb[0].mxu0
    %1342 = vdwg.mxu0
    %v1343 = vadd.f32 %v1294, %v1337
    %v1344 = vadd.f32 %v1295, %v1339
    %v1345 = vxor.u32 %v1343, 2147483648
    %v1346 = vxor.u32 %v1344, 2147483648
    %v1347 = vmul.f32 %v1345, 1.442695
    %v1348 = vpow.pop %v1347
    %v1349 = vmul.f32 %v1346, 1.442695
    %v1350 = vpow.pop %v1349
    %v1351 = vadd.f32 %v1348, 1.0
    %v1352 = vadd.f32 %v1350, 1.0
    %v1353 = vrcp.pop %v1351
    %v1354 = vmul.f32 1.0, %v1353
    %v1355 = vrcp.pop %v1352
    %v1356 = vmul.f32 1.0, %v1355
    %v1357 = vmul.f32 %v1356, 2.0
    %v1358 = vsub.f32 %v1357, 1.0
    %v1359 = vmul.f32 %v1354, %v1285
    %v1360 = vmul.f32 %v1354, %v1358
    %1362 = vrot.lane.b32.xlu0 %v1360, 64
    %v1363 = vpop.permute.xlu0 %1362
    %v1365 = vadd.f32 %v1359, %v1363
    %v1366 = vtanh.pop %v1365
    %v1367 = vmul.f32 %v1356, %v1366
    %1369 = vrot.lane.b32.xlu0 %v1367, 64
    %v1370 = vpop.permute.xlu0 %1369
    %1372 = vst.msk [vmem:[%s553] sm:$0xff] %vm228, %v1370
    %v1373 = vpack.c.bf16 %v1367, %v1367
    %v1374 = vld [vmem:[%s558] sm:$0xff]
    %v1375 = vld [vmem:[%s558 + $0x8] sm:$0xff]
    %1377 = vrot.lane.b32.xlu0 %v1373, 64
    %v1378 = vpop.permute.xlu0 %1377
    %v1380 = vsel %vm228, %v1378, 0
    %1382 = vmatprep.subr.bf16.mxu0 %v1047
    %1383 = vmatpush1.bf16.msra.mxu0 %v1046
    %1384 = vmatprep.subr.bf16.mxu0 %v1049
    %1385 = vmatpush1.bf16.msra.mxu0 %v1048
    %1386 = vmatprep.subr.bf16.mxu0 %v1051
    %1387 = vmatpush1.bf16.msra.mxu0 %v1050
    %1388 = vmatprep.subr.bf16.mxu0 %v1053
    %1389 = vmatpush1.bf16.msra.mxu0 %v1052
    %1390 = vmatprep.subr.bf16.mxu0 0
    %1391 = vmatpush1.bf16.msra.mxu0 0
    %1392 = vmatprep.subr.bf16.mxu0 0
    %1393 = vmatpush1.bf16.msra.mxu0 0
    %1394 = vmatprep.subr.bf16.mxu0 0
    %1395 = vmatpush1.bf16.msra.mxu0 0
    %1396 = vmatprep.subr.bf16.mxu0 0
    %1397 = vmatpush1.bf16.msra.mxu0 0
    %1398 = vmatprep.subr.bf16.mxu0 0
    %1399 = vmatpush1.bf16.msra.mxu0 0
    %1400 = vmatprep.subr.bf16.mxu0 0
    %1401 = vmatpush1.bf16.msra.mxu0 0
    %1402 = vmatprep.subr.bf16.mxu0 0
    %1403 = vmatpush1.bf16.msra.mxu0 0
    %1404 = vmatprep.subr.bf16.mxu0 0
    %1405 = vmatpush1.bf16.msra.mxu0 0
    %1406 = vmatprep.subr.bf16.mxu0 0
    %1407 = vmatpush1.bf16.msra.mxu0 0
    %1408 = vmatprep.subr.bf16.mxu0 0
    %1409 = vmatpush1.bf16.msra.mxu0 0
    %1410 = vmatprep.subr.bf16.mxu0 0
    %1411 = vmatpush1.bf16.msra.mxu0 0
    %1412 = vmatprep.subr.bf16.mxu0 0
    %1413 = vmatpush1.bf16.msra.mxu0 0
    %1414 = vmatprep.mubr.bf16.mxu0 0
    %1415 = vmatmul.mubr.bf16.gmra.mrb[0].mxu0 %v1380
    %v1416 = vpop.f32.mrb[0].mxu0
    %v1417 = vadd.f32 0.0, %v1416
    %v1418 = vpop.f32.mrb[0].mxu0
    %v1419 = vadd.f32 0.0, %v1418
    %v1420 = vpop.f32.mrb[0].mxu0
    %v1421 = vpop.f32.mrb[0].mxu0
    %1422 = vdwg.mxu0
    %v1423 = vadd.f32 %v1374, %v1417
    %v1424 = vadd.f32 %v1375, %v1419
    %v1425 = vxor.u32 %v1423, 2147483648
    %v1426 = vxor.u32 %v1424, 2147483648
    %v1427 = vmul.f32 %v1425, 1.442695
    %v1428 = vpow.pop %v1427
    %v1429 = vmul.f32 %v1426, 1.442695
    %v1430 = vpow.pop %v1429
    %v1431 = vadd.f32 %v1428, 1.0
    %v1432 = vadd.f32 %v1430, 1.0
    %v1433 = vrcp.pop %v1431
    %v1434 = vmul.f32 1.0, %v1433
    %v1435 = vrcp.pop %v1432
    %v1436 = vmul.f32 1.0, %v1435
    %v1437 = vmul.f32 %v1436, 2.0
    %v1438 = vsub.f32 %v1437, 1.0
    %v1439 = vmul.f32 %v1434, %v1365
    %v1440 = vmul.f32 %v1434, %v1438
    %1442 = vrot.lane.b32.xlu0 %v1440, 64
    %v1443 = vpop.permute.xlu0 %1442
    %v1445 = vadd.f32 %v1439, %v1443
    %v1446 = vtanh.pop %v1445
    %v1447 = vmul.f32 %v1436, %v1446
    %1449 = vrot.lane.b32.xlu0 %v1447, 64
    %v1450 = vpop.permute.xlu0 %1449
    %1452 = vst.msk [vmem:[%s637] sm:$0xff] %vm228, %v1450
    %v1453 = vpack.c.bf16 %v1447, %v1447
    %v1454 = vld [vmem:[%s642] sm:$0xff]
    %v1455 = vld [vmem:[%s642 + $0x8] sm:$0xff]
    %1457 = vrot.lane.b32.xlu0 %v1453, 64
    %v1458 = vpop.permute.xlu0 %1457
    %v1460 = vsel %vm228, %v1458, 0
    %1462 = vmatprep.subr.bf16.mxu0 %v1047
    %1463 = vmatpush1.bf16.msra.mxu0 %v1046
    %1464 = vmatprep.subr.bf16.mxu0 %v1049
    %1465 = vmatpush1.bf16.msra.mxu0 %v1048
    %1466 = vmatprep.subr.bf16.mxu0 %v1051
    %1467 = vmatpush1.bf16.msra.mxu0 %v1050
    %1468 = vmatprep.subr.bf16.mxu0 %v1053
    %1469 = vmatpush1.bf16.msra.mxu0 %v1052
    %1470 = vmatprep.subr.bf16.mxu0 0
    %1471 = vmatpush1.bf16.msra.mxu0 0
    %1472 = vmatprep.subr.bf16.mxu0 0
    %1473 = vmatpush1.bf16.msra.mxu0 0
    %1474 = vmatprep.subr.bf16.mxu0 0
    %1475 = vmatpush1.bf16.msra.mxu0 0
    %1476 = vmatprep.subr.bf16.mxu0 0
    %1477 = vmatpush1.bf16.msra.mxu0 0
    %1478 = vmatprep.subr.bf16.mxu0 0
    %1479 = vmatpush1.bf16.msra.mxu0 0
    %1480 = vmatprep.subr.bf16.mxu0 0
    %1481 = vmatpush1.bf16.msra.mxu0 0
    %1482 = vmatprep.subr.bf16.mxu0 0
    %1483 = vmatpush1.bf16.msra.mxu0 0
    %1484 = vmatprep.subr.bf16.mxu0 0
    %1485 = vmatpush1.bf16.msra.mxu0 0
    %1486 = vmatprep.subr.bf16.mxu0 0
    %1487 = vmatpush1.bf16.msra.mxu0 0
    %1488 = vmatprep.subr.bf16.mxu0 0
    %1489 = vmatpush1.bf16.msra.mxu0 0
    %1490 = vmatprep.subr.bf16.mxu0 0
    %1491 = vmatpush1.bf16.msra.mxu0 0
    %1492 = vmatprep.subr.bf16.mxu0 0
    %1493 = vmatpush1.bf16.msra.mxu0 0
    %1494 = vmatprep.mubr.bf16.mxu0 0
    %1495 = vmatmul.mubr.bf16.gmra.mrb[0].mxu0 %v1460
    %v1496 = vpop.f32.mrb[0].mxu0
    %v1497 = vadd.f32 0.0, %v1496
    %v1498 = vpop.f32.mrb[0].mxu0
    %v1499 = vadd.f32 0.0, %v1498
    %v1500 = vpop.f32.mrb[0].mxu0
    %v1501 = vpop.f32.mrb[0].mxu0
    %1502 = vdwg.mxu0
    %v1503 = vadd.f32 %v1454, %v1497
    %v1504 = vadd.f32 %v1455, %v1499
    %v1505 = vxor.u32 %v1503, 2147483648
    %v1506 = vxor.u32 %v1504, 2147483648
    %v1507 = vmul.f32 %v1505, 1.442695
    %v1508 = vpow.pop %v1507
    %v1509 = vmul.f32 %v1506, 1.442695
    %v1510 = vpow.pop %v1509
    %v1511 = vadd.f32 %v1508, 1.0
    %v1512 = vadd.f32 %v1510, 1.0
    %v1513 = vrcp.pop %v1511
    %v1514 = vmul.f32 1.0, %v1513
    %v1515 = vrcp.pop %v1512
    %v1516 = vmul.f32 1.0, %v1515
    %v1517 = vmul.f32 %v1516, 2.0
    %v1518 = vsub.f32 %v1517, 1.0
    %v1519 = vmul.f32 %v1514, %v1445
    %v1520 = vmul.f32 %v1514, %v1518
    %1522 = vrot.lane.b32.xlu0 %v1520, 64
    %v1523 = vpop.permute.xlu0 %1522
    %v1525 = vadd.f32 %v1519, %v1523
    %v1526 = vtanh.pop %v1525
    %v1527 = vmul.f32 %v1516, %v1526
    %1529 = vrot.lane.b32.xlu0 %v1527, 64
    %v1530 = vpop.permute.xlu0 %1529
    %1532 = vst.msk [vmem:[%s721] sm:$0xff] %vm228, %v1530
    %v1533 = vpack.c.bf16 %v1527, %v1527
    %v1534 = vld [vmem:[%s726] sm:$0xff]
    %v1535 = vld [vmem:[%s726 + $0x8] sm:$0xff]
    %1537 = vrot.lane.b32.xlu0 %v1533, 64
    %v1538 = vpop.permute.xlu0 %1537
    %v1540 = vsel %vm228, %v1538, 0
    %1542 = vmatprep.subr.bf16.mxu0 %v1047
    %1543 = vmatpush1.bf16.msra.mxu0 %v1046
    %1544 = vmatprep.subr.bf16.mxu0 %v1049
    %1545 = vmatpush1.bf16.msra.mxu0 %v1048
    %1546 = vmatprep.subr.bf16.mxu0 %v1051
    %1547 = vmatpush1.bf16.msra.mxu0 %v1050
    %1548 = vmatprep.subr.bf16.mxu0 %v1053
    %1549 = vmatpush1.bf16.msra.mxu0 %v1052
    %1550 = vmatprep.subr.bf16.mxu0 0
    %1551 = vmatpush1.bf16.msra.mxu0 0
    %1552 = vmatprep.subr.bf16.mxu0 0
    %1553 = vmatpush1.bf16.msra.mxu0 0
    %1554 = vmatprep.subr.bf16.mxu0 0
    %1555 = vmatpush1.bf16.msra.mxu0 0
    %1556 = vmatprep.subr.bf16.mxu0 0
    %1557 = vmatpush1.bf16.msra.mxu0 0
    %1558 = vmatprep.subr.bf16.mxu0 0
    %1559 = vmatpush1.bf16.msra.mxu0 0
    %1560 = vmatprep.subr.bf16.mxu0 0
    %1561 = vmatpush1.bf16.msra.mxu0 0
    %1562 = vmatprep.subr.bf16.mxu0 0
    %1563 = vmatpush1.bf16.msra.mxu0 0
    %1564 = vmatprep.subr.bf16.mxu0 0
    %1565 = vmatpush1.bf16.msra.mxu0 0
    %1566 = vmatprep.subr.bf16.mxu0 0
    %1567 = vmatpush1.bf16.msra.mxu0 0
    %1568 = vmatprep.subr.bf16.mxu0 0
    %1569 = vmatpush1.bf16.msra.mxu0 0
    %1570 = vmatprep.subr.bf16.mxu0 0
    %1571 = vmatpush1.bf16.msra.mxu0 0
    %1572 = vmatprep.subr.bf16.mxu0 0
    %1573 = vmatpush1.bf16.msra.mxu0 0
    %1574 = vmatprep.mubr.bf16.mxu0 0
    %1575 = vmatmul.mubr.bf16.gmra.mrb[0].mxu0 %v1540
    %v1576 = vpop.f32.mrb[0].mxu0
    %v1577 = vadd.f32 0.0, %v1576
    %v1578 = vpop.f32.mrb[0].mxu0
    %v1579 = vadd.f32 0.0, %v1578
    %v1580 = vpop.f32.mrb[0].mxu0
    %v1581 = vpop.f32.mrb[0].mxu0
    %1582 = vdwg.mxu0
    %v1583 = vadd.f32 %v1534, %v1577
    %v1584 = vadd.f32 %v1535, %v1579
    %v1585 = vxor.u32 %v1583, 2147483648
    %v1586 = vxor.u32 %v1584, 2147483648
    %v1587 = vmul.f32 %v1585, 1.442695
    %v1588 = vpow.pop %v1587
    %v1589 = vmul.f32 %v1586, 1.442695
    %v1590 = vpow.pop %v1589
    %v1591 = vadd.f32 %v1588, 1.0
    %v1592 = vadd.f32 %v1590, 1.0
    %v1593 = vrcp.pop %v1591
    %v1594 = vmul.f32 1.0, %v1593
    %v1595 = vrcp.pop %v1592
    %v1596 = vmul.f32 1.0, %v1595
    %v1597 = vmul.f32 %v1596, 2.0
    %v1598 = vsub.f32 %v1597, 1.0
    %v1599 = vmul.f32 %v1594, %v1525
    %v1600 = vmul.f32 %v1594, %v1598
    %1602 = vrot.lane.b32.xlu0 %v1600, 64
    %v1603 = vpop.permute.xlu0 %1602
    %v1605 = vadd.f32 %v1599, %v1603
    %v1606 = vtanh.pop %v1605
    %v1607 = vmul.f32 %v1596, %v1606
    %1609 = vrot.lane.b32.xlu0 %v1607, 64
    %v1610 = vpop.permute.xlu0 %1609
    %1612 = vst.msk [vmem:[%s805] sm:$0xff] %vm228, %v1610
    %v1613 = vpack.c.bf16 %v1607, %v1607
    %v1614 = vld [vmem:[%s810] sm:$0xff]
    %v1615 = vld [vmem:[%s810 + $0x8] sm:$0xff]
    %1617 = vrot.lane.b32.xlu0 %v1613, 64
    %v1618 = vpop.permute.xlu0 %1617
    %v1620 = vsel %vm228, %v1618, 0
    %1622 = vmatprep.subr.bf16.mxu0 %v1047
    %1623 = vmatpush1.bf16.msra.mxu0 %v1046
    %1624 = vmatprep.subr.bf16.mxu0 %v1049
    %1625 = vmatpush1.bf16.msra.mxu0 %v1048
    %1626 = vmatprep.subr.bf16.mxu0 %v1051
    %1627 = vmatpush1.bf16.msra.mxu0 %v1050
    %1628 = vmatprep.subr.bf16.mxu0 %v1053
    %1629 = vmatpush1.bf16.msra.mxu0 %v1052
    %1630 = vmatprep.subr.bf16.mxu0 0
    %1631 = vmatpush1.bf16.msra.mxu0 0
    %1632 = vmatprep.subr.bf16.mxu0 0
    %1633 = vmatpush1.bf16.msra.mxu0 0
    %1634 = vmatprep.subr.bf16.mxu0 0
    %1635 = vmatpush1.bf16.msra.mxu0 0
    %1636 = vmatprep.subr.bf16.mxu0 0
    %1637 = vmatpush1.bf16.msra.mxu0 0
    %1638 = vmatprep.subr.bf16.mxu0 0
    %1639 = vmatpush1.bf16.msra.mxu0 0
    %1640 = vmatprep.subr.bf16.mxu0 0
    %1641 = vmatpush1.bf16.msra.mxu0 0
    %1642 = vmatprep.subr.bf16.mxu0 0
    %1643 = vmatpush1.bf16.msra.mxu0 0
    %1644 = vmatprep.subr.bf16.mxu0 0
    %1645 = vmatpush1.bf16.msra.mxu0 0
    %1646 = vmatprep.subr.bf16.mxu0 0
    %1647 = vmatpush1.bf16.msra.mxu0 0
    %1648 = vmatprep.subr.bf16.mxu0 0
    %1649 = vmatpush1.bf16.msra.mxu0 0
    %1650 = vmatprep.subr.bf16.mxu0 0
    %1651 = vmatpush1.bf16.msra.mxu0 0
    %1652 = vmatprep.subr.bf16.mxu0 0
    %1653 = vmatpush1.bf16.msra.mxu0 0
    %1654 = vmatprep.mubr.bf16.mxu0 0
    %1655 = vmatmul.mubr.bf16.gmra.mrb[0].mxu0 %v1620
    %v1656 = vpop.f32.mrb[0].mxu0
    %v1657 = vadd.f32 0.0, %v1656
    %v1658 = vpop.f32.mrb[0].mxu0
    %v1659 = vadd.f32 0.0, %v1658
    %v1660 = vpop.f32.mrb[0].mxu0
    %v1661 = vpop.f32.mrb[0].mxu0
    %1662 = vdwg.mxu0
    %v1663 = vadd.f32 %v1614, %v1657
    %v1664 = vadd.f32 %v1615, %v1659
    %v1665 = vxor.u32 %v1663, 2147483648
    %v1666 = vxor.u32 %v1664, 2147483648
    %v1667 = vmul.f32 %v1665, 1.442695
    %v1668 = vpow.pop %v1667
    %v1669 = vmul.f32 %v1666, 1.442695
    %v1670 = vpow.pop %v1669
    %v1671 = vadd.f32 %v1668, 1.0
    %v1672 = vadd.f32 %v1670, 1.0
    %v1673 = vrcp.pop %v1671
    %v1674 = vmul.f32 1.0, %v1673
    %v1675 = vrcp.pop %v1672
    %v1676 = vmul.f32 1.0, %v1675
    %v1677 = vmul.f32 %v1676, 2.0
    %v1678 = vsub.f32 %v1677, 1.0
    %v1679 = vmul.f32 %v1674, %v1605
    %v1680 = vmul.f32 %v1674, %v1678
    %1682 = vrot.lane.b32.xlu0 %v1680, 64
    %v1683 = vpop.permute.xlu0 %1682
    %v1685 = vadd.f32 %v1679, %v1683
    %v1686 = vtanh.pop %v1685
    %v1687 = vmul.f32 %v1676, %v1686
    %1689 = vrot.lane.b32.xlu0 %v1687, 64
    %v1690 = vpop.permute.xlu0 %1689
    %1692 = vst.msk [vmem:[%s889] sm:$0xff] %vm228, %v1690
    loop: start=0, step=1, limit=8
    $region68: #{tpu_custom_call.1} parent=1 // loop_pre_header
      _
    $region69: #{tpu_custom_call.1} parent=1 // loop_header
      %s1694 = sphi 0, %s1698
      %p1695 = scmp.ge.s32.totalorder %s1694, 8
    $region70: #{tpu_custom_call.1} parent=1 // loop_header_branch
      %1697 = sbr.rel (%p1695) target = $region74
    $region71: #{tpu_custom_call.1} parent=1 // loop_body
      %s1699 = smul.u32 %s1694, 8
      %s1700 = scalar_lea.vmem [#allocation3], %s1699
      %v1701 = vld [vmem:[%s1700] sm:$0xff]
      %v1702 = vpack.c.bf16 %v1701, %v1701
      %v1703 = vld [vmem:[#allocation10] sm:$0xf]
      %v1704 = vld [vmem:[#allocation10 + $0x4] sm:$0xf]
      %v1705 = vld [vmem:[#allocation10 + $0x8] sm:$0xf]
      %v1706 = vld [vmem:[#allocation10 + $0xc] sm:$0xf]
      %v1707 = vld [vmem:[#allocation10 + $0x10] sm:$0xf]
      %v1708 = vld [vmem:[#allocation10 + $0x14] sm:$0xf]
      %v1709 = vld [vmem:[#allocation10 + $0x18] sm:$0xf]
      %v1710 = vld [vmem:[#allocation10 + $0x1c] sm:$0xf]
      %v1711 = vld [vmem:[%s8] sm:$0x1]
      %v1713 = vlaneseq
      %v1714 = vshrl.u32 %v1713, 7
      %v1715 = vsub.s32 0, %v1714
      %v1716 = vrot.slane %v1711, %v1715
      %v1726 = vunpack.c.l.b16 %v1703
      %v1727 = vunpack.c.l.b16 %v1704
      %v1728 = vunpack.c.l.b16 %v1705
      %v1729 = vunpack.c.l.b16 %v1706
      %v1730 = vunpack.c.l.b16 %v1707
      %v1731 = vunpack.c.l.b16 %v1708
      %v1732 = vunpack.c.l.b16 %v1709
      %v1733 = vunpack.c.l.b16 %v1710
      %v1734 = vpack.c.b16 %v1727, %v1726
      %v1735 = vpack.c.b16 %v1729, %v1728
      %v1736 = vpack.c.b16 %v1731, %v1730
      %v1737 = vpack.c.b16 %v1733, %v1732
      %v1743 = vsel %vm228, %v1702, 0
      %1745 = vmatprep.subr.bf16.mxu0 0
      %1746 = vmatpush1.bf16.msra.mxu0 %v1734
      %1747 = vmatprep.subr.bf16.mxu0 0
      %1748 = vmatpush1.bf16.msra.mxu0 %v1735
      %1749 = vmatprep.subr.bf16.mxu0 0
      %1750 = vmatpush1.bf16.msra.mxu0 %v1736
      %1751 = vmatprep.subr.bf16.mxu0 0
      %1752 = vmatpush1.bf16.msra.mxu0 %v1737
      %1753 = vmatprep.subr.bf16.mxu0 0
      %1754 = vmatpush1.bf16.msra.mxu0 0
      %1755 = vmatprep.subr.bf16.mxu0 0
      %1756 = vmatpush1.bf16.msra.mxu0 0
      %1757 = vmatprep.subr.bf16.mxu0 0
      %1758 = vmatpush1.bf16.msra.mxu0 0
      %1759 = vmatprep.subr.bf16.mxu0 0
      %1760 = vmatpush1.bf16.msra.mxu0 0
      %1761 = vmatprep.subr.bf16.mxu0 0
      %1762 = vmatpush1.bf16.msra.mxu0 0
      %1763 = vmatprep.subr.bf16.mxu0 0
      %1764 = vmatpush1.bf16.msra.mxu0 0
      %1765 = vmatprep.subr.bf16.mxu0 0
      %1766 = vmatpush1.bf16.msra.mxu0 0
      %1767 = vmatprep.subr.bf16.mxu0 0
      %1768 = vmatpush1.bf16.msra.mxu0 0
      %1769 = vmatprep.subr.bf16.mxu0 0
      %1770 = vmatpush1.bf16.msra.mxu0 0
      %1771 = vmatprep.subr.bf16.mxu0 0
      %1772 = vmatpush1.bf16.msra.mxu0 0
      %1773 = vmatprep.subr.bf16.mxu0 0
      %1774 = vmatpush1.bf16.msra.mxu0 0
      %1775 = vmatprep.subr.bf16.mxu0 0
      %1776 = vmatpush1.bf16.msra.mxu0 0
      %1777 = vmatprep.mubr.bf16.mxu0 0
      %1778 = vmatmul.mubr.bf16.gmra.mrb[0].mxu0 %v1743
      %v1779 = vpop.f32.mrb[0].mxu0
      %v1780 = vadd.f32 %v1716, %v1779
      %v1781 = vpop.f32.mrb[0].mxu0
      %v1782 = vpop.f32.mrb[0].mxu0
      %v1783 = vpop.f32.mrb[0].mxu0
      %1784 = vdwg.mxu0
      %1785 = vmax.xlane.f32.xlu0 %v1780
      %v1786 = vpop.xlane.xlu0 %1785
      %v1787 = vsub.f32 %v1780, %v1786
      %v1788 = vmul.f32 %v1787, 1.442695
      %v1789 = vpow.pop %v1788
      %1790 = vadd.xlane.f32.xlu0 %v1789
      %v1791 = vpop.xlane.xlu0 %1790
      %v1792 = vrcp.pop %v1791
      %v1793 = vmul.f32 %v1789, %v1792
      %s1794 = scalar_lea.vmem [#allocation12], %s1699
      %1795 = vst [vmem:[%s1794] sm:$0xff] %v1793
    $region72: #{tpu_custom_call.1} parent=1 // loop_footer
      %s1698 = sadd.s32 1, %s1694
    $region73: #{tpu_custom_call.1} parent=1 // loop_footer_branch
      %1693 = sbr.rel target = $region69
    $region74: #{tpu_custom_call.1} parent=1 // loop_exit
      _
    // Predicated region
    $region75: #{tpu_custom_call.1} parent=1 // pred_check
      _
    $region76: #{tpu_custom_call.1} parent=1 // pred_check_branch
      %1797 = sbr.rel (0) target = $region78
    $region77: #{tpu_custom_call.1} parent=1 // pred_region
      %s1799 = ssub.s32 1024, 1024
      %1800 = vsyncadd [#allocation6], %s1799
      %s1801 = sshll.u32 [#allocation12], 4
      %s1802 = int_to_ptr.vmem [resolvable:$true] %s1801
      %1807 = dma.vmem_to_hbm [thread:$0]  %s1802, 1024, %s9, [#allocation6], 128, 128, 8
    $region78: #{tpu_custom_call.1} parent=1 // pred_fallthru
      _
    // Predicated region
    $region79: #{tpu_custom_call.1} parent=1 // pred_check
      _
    $region80: #{tpu_custom_call.1} parent=1 // pred_check_branch
      %1809 = sbr.rel (0) target = $region82
    $region81: #{tpu_custom_call.1} parent=1 // pred_region
      %1810 = dma.done [#allocation6], 1024
    $region82: #{tpu_custom_call.1} parent=1 // pred_fallthru
      _
    %1811 = vsyncpa [#allocation5], 1
    %1812 = vsyncpa [#allocation8], 1
    %1813 = vsyncpa [#allocation11], 1
    %1814 = vsyncpa [#allocation6], 1

</llo_original>
